<compile_context>
chip_gen: v5e
topology: v5e:2x2
jax: 0.10.0
libtpu: 0.0.40
codegen_flags: <defaults>
</compile_context>

<pallas_src>
import functools

import jax
import jax.numpy as jnp
from jax.experimental import pallas as pl
from jax.experimental.pallas import tpu as pltpu

HEAD_LANES = 128  # fused actor+critic head padded to one lane-dense slab


def _elu(x):
    # F.elu with alpha=1.0
    return jnp.where(x > 0, x, jnp.exp(x) - 1.0)


def actor_critic_kernel(act_dim,
                        state_ref, maskb_ref, d1_ref, d2_ref,
                        w1_ref, b1_ref, w2_ref, b2_ref, wh_ref, bh_ref,
                        out_ref):
    # ---- l1 -> ELU -> dropout ----
    x = jnp.dot(state_ref[...].astype(jnp.bfloat16), w1_ref[...],
                preferred_element_type=jnp.float32) + b1_ref[...]
    x = _elu(x) * d1_ref[...]

    # ---- l2 -> ELU -> dropout ----
    x = jnp.dot(x.astype(jnp.bfloat16), w2_ref[...],
                preferred_element_type=jnp.float32) + b2_ref[...]
    x = _elu(x) * d2_ref[...]

    # ---- fused actor + critic head: one lane-dense [B, 128] matmul ----
    head = jnp.dot(x.astype(jnp.bfloat16), wh_ref[...],
                   preferred_element_type=jnp.float32) + bh_ref[...]
    value = head[:, act_dim:act_dim + 1]          # critic column (pre-mask)

    # masked softmax over the padded slab (invalid / critic / pad lanes get
    # -999999 from the additive bias, so they contribute exactly 0)
    logits = head + maskb_ref[...]
    m = jnp.max(logits, axis=-1, keepdims=True)
    e = jnp.exp(logits - m)
    denom = jnp.sum(e, axis=-1, keepdims=True)
    probs = e * pl.reciprocal(denom, approx=True)

    # pack probs (cols < act_dim) and the state value (col act_dim) into one
    # lane-dense output slab -> full unmasked vector stores
    lane = jax.lax.broadcasted_iota(jnp.int32, probs.shape, 1)
    out_ref[...] = jnp.where(lane == act_dim, value, probs)


def actor_critic_forward(dropout_key, state, act_mask, params):
    """ActorCritic.original_forward as one batch-gridded Pallas call.

    Returns (act_probs [B, A], state_values [B, 1])."""
    B, state_dim = state.shape
    h1 = params["w1"].shape[1]
    h2 = params["w2"].shape[1]
    act_dim = params["wa"].shape[1]
    assert act_dim < HEAD_LANES, "fused head assumes act_dim < 128"

    # --- fuse actor + critic into one padded, lane-dense head weight ---
    wh = jnp.zeros((h2, HEAD_LANES), jnp.float32)
    wh = wh.at[:, :act_dim].set(params["wa"])
    wh = wh.at[:, act_dim:act_dim + 1].set(params["wc"])
    bh = jnp.zeros((1, HEAD_LANES), jnp.float32)
    bh = bh.at[:, :act_dim].set(params["ba"])
    bh = bh.at[:, act_dim:act_dim + 1].set(params["bc"])

    # bf16 weights for native MXU rate; accumulation stays f32 in-kernel.
    w1 = params["w1"].astype(jnp.bfloat16)
    w2 = params["w2"].astype(jnp.bfloat16)
    wh = wh.astype(jnp.bfloat16)
    b1, b2 = params["b1"], params["b2"]

    # --- additive mask bias, padded to the 128-lane slab ---
    # valid action -> 0, invalid action -> -999999, critic col & pads -> -999999
    mask_bias = jnp.full((B, HEAD_LANES), -999999.0, jnp.float32)
    mask_bias = mask_bias.at[:, :act_dim].set(
        (act_mask.astype(jnp.float32) - 1.0) * 999999.0)

    # --- dropout (p=0.5, active as in F.dropout's training=True default) ---
    k1, k2 = jax.random.split(dropout_key)
    d1 = jax.random.bernoulli(k1, 0.5, (B, h1)).astype(jnp.float32) * 2.0
    d2 = jax.random.bernoulli(k2, 0.5, (B, h2)).astype(jnp.float32) * 2.0

    # --- batch grid: shards rows across TensorCores (v7x) and pipelines DMA ---
    block_b = 128 if B % 128 == 0 else B
    grid = (B // block_b,)

    batch_spec = lambda cols: pl.BlockSpec((block_b, cols), lambda i: (i, 0))
    const_spec = lambda r, c: pl.BlockSpec((r, c), lambda i: (0, 0))

    out = pl.pallas_call(
        functools.partial(actor_critic_kernel, act_dim),
        out_shape=jax.ShapeDtypeStruct((B, HEAD_LANES), jnp.float32),
        grid=grid,
        in_specs=[
            batch_spec(state_dim),        # state
            batch_spec(HEAD_LANES),       # additive mask bias (padded)
            batch_spec(h1),               # dropout scale mask 1
            batch_spec(h2),               # dropout scale mask 2
            const_spec(state_dim, h1),    # w1  (VMEM-resident across grid)
            const_spec(1, h1),            # b1
            const_spec(h1, h2),           # w2
            const_spec(1, h2),            # b2
            const_spec(h2, HEAD_LANES),   # fused actor+critic weight
            const_spec(1, HEAD_LANES),    # fused actor+critic bias
        ],
        out_specs=batch_spec(HEAD_LANES),
        compiler_params=pltpu.CompilerParams(
            dimension_semantics=("parallel",)),
    )(state, mask_bias, d1, d2, w1, b1, w2, b2, wh, bh)

    probs = out[:, :act_dim]
    values = out[:, act_dim:act_dim + 1]
    return probs, values


def init_params(key, state_dim, hidden_sizes, act_dim):
    """Deterministic synthetic parameters (PyTorch-Linear-like uniform init),
    stored as [in, out] for the kernel."""
    def linear(k, fan_in, fan_out):
        kw, kb = jax.random.split(k)
        bound = 1.0 / jnp.sqrt(jnp.float32(fan_in))
        w = jax.random.uniform(kw, (fan_in, fan_out), jnp.float32, -bound, bound)
        b = jax.random.uniform(kb, (1, fan_out), jnp.float32, -bound, bound)
        return w, b

    k1, k2, k3, k4 = jax.random.split(key, 4)
    w1, b1 = linear(k1, state_dim, hidden_sizes[0])
    w2, b2 = linear(k2, hidden_sizes[0], hidden_sizes[1])
    wa, ba = linear(k3, hidden_sizes[1], act_dim)
    wc, bc = linear(k4, hidden_sizes[1], 1)
    return dict(w1=w1, b1=b1, w2=w2, b2=b2, wa=wa, ba=ba, wc=wc, bc=bc)


if __name__ == "__main__":
    # Shapes consistent with the module (state -> l1 -> l2 -> actor/critic).
    # Batch 256 with a 128-row block gives a 2-step parallel batch grid.
    B = 256
    STATE_DIM = 64
    HIDDEN = [128, 128]
    ACT_DIM = 32

    key = jax.random.PRNGKey(0)
    kp, ks, km, kd = jax.random.split(key, 4)

    params = init_params(kp, STATE_DIM, HIDDEN, ACT_DIM)
    state = jax.random.normal(ks, (B, STATE_DIM), jnp.float32)
    act_mask = (jax.random.uniform(km, (B, ACT_DIM)) > 0.5).astype(jnp.int32)
    # guarantee at least one valid action per row (as the env would)
    act_mask = act_mask.at[:, 0].set(1)

    probs, values = actor_critic_forward(kd, state, act_mask, params)
    probs, values = jax.block_until_ready((probs, values))

    # sanity: shapes, probabilities sum to ~1 per row, masked actions have
    # exactly-zero probability, values are finite
    assert probs.shape == (B, ACT_DIM) and values.shape == (B, 1)
    assert bool(jnp.allclose(jnp.sum(probs, axis=-1), 1.0, atol=2e-2))
    assert float(jnp.max(jnp.where(act_mask == 0, probs, 0.0))) < 1e-6
    assert bool(jnp.all(jnp.isfinite(values)))

    print("KERNEL_OK")
</pallas_src>

<mosaic_0001>
module attributes {stable_mosaic.version = 11 : i64} {
  func.func @actor_critic_kernel(%arg0: i32, %arg1: memref<128x64xf32, #tpu.memory_space<vmem>>, %arg2: memref<128x128xf32, #tpu.memory_space<vmem>>, %arg3: memref<128x128xf32, #tpu.memory_space<vmem>>, %arg4: memref<128x128xf32, #tpu.memory_space<vmem>>, %arg5: memref<64x128xbf16, #tpu.memory_space<vmem>>, %arg6: memref<1x128xf32, #tpu.memory_space<vmem>>, %arg7: memref<128x128xbf16, #tpu.memory_space<vmem>>, %arg8: memref<1x128xf32, #tpu.memory_space<vmem>>, %arg9: memref<128x128xbf16, #tpu.memory_space<vmem>>, %arg10: memref<1x128xf32, #tpu.memory_space<vmem>>, %arg11: memref<128x128xf32, #tpu.memory_space<vmem>>) attributes {dimension_semantics = [#tpu.dimension_semantics<parallel>], iteration_bounds = array<i64: 2>, scalar_prefetch = 0 : i64, scratch_operands = 0 : i64, tpu.core_type = #tpu.core_type<tc>, window_params = [{transform_indices = @transform_0, window_bounds = array<i64: 128, 64>}, {transform_indices = @transform_1, window_bounds = array<i64: 128, 128>}, {transform_indices = @transform_2, window_bounds = array<i64: 128, 128>}, {transform_indices = @transform_3, window_bounds = array<i64: 128, 128>}, {pipeline_mode = #tpu.pipeline_mode<synchronous>, transform_indices = @transform_4, window_bounds = array<i64: 64, 128>}, {pipeline_mode = #tpu.pipeline_mode<synchronous>, transform_indices = @transform_5, window_bounds = array<i64: 1, 128>}, {pipeline_mode = #tpu.pipeline_mode<synchronous>, transform_indices = @transform_6, window_bounds = array<i64: 128, 128>}, {pipeline_mode = #tpu.pipeline_mode<synchronous>, transform_indices = @transform_7, window_bounds = array<i64: 1, 128>}, {pipeline_mode = #tpu.pipeline_mode<synchronous>, transform_indices = @transform_8, window_bounds = array<i64: 128, 128>}, {pipeline_mode = #tpu.pipeline_mode<synchronous>, transform_indices = @transform_9, window_bounds = array<i64: 1, 128>}, {transform_indices = @transform_10, window_bounds = array<i64: 128, 128>}]} {
    %c0 = arith.constant 0 : index
    %c0_0 = arith.constant 0 : index
    %0 = vector.load %arg1[%c0, %c0_0] : memref<128x64xf32, #tpu.memory_space<vmem>>, vector<128x64xf32>
    %1 = arith.truncf %0 : vector<128x64xf32> to vector<128x64xbf16>
    %c0_1 = arith.constant 0 : index
    %c0_2 = arith.constant 0 : index
    %2 = vector.load %arg5[%c0_1, %c0_2] : memref<64x128xbf16, #tpu.memory_space<vmem>>, vector<64x128xbf16>
    %cst = arith.constant dense<0.000000e+00> : vector<128x128xf32>
    %3 = tpu.matmul %1, %2, %cst {dimension_numbers = #tpu.dot_dimension_numbers<[1], [0], [0], [1], [0, 0, 1, 1], [], []>} : vector<128x64xbf16>, vector<64x128xbf16>, vector<128x128xf32> -> vector<128x128xf32>
    %c0_3 = arith.constant 0 : index
    %c0_4 = arith.constant 0 : index
    %4 = vector.load %arg6[%c0_3, %c0_4] : memref<1x128xf32, #tpu.memory_space<vmem>>, vector<1x128xf32>
    %5 = vector.broadcast %4 : vector<1x128xf32> to vector<128x128xf32>
    %6 = arith.addf %3, %5 : vector<128x128xf32>
    %cst_5 = arith.constant 0.000000e+00 : f32
    %7 = vector.broadcast %cst_5 : f32 to vector<128x128xf32>
    %8 = arith.cmpf ogt, %6, %7 : vector<128x128xf32>
    %9 = math.exp %6 : vector<128x128xf32>
    %cst_6 = arith.constant 1.000000e+00 : f32
    %10 = vector.broadcast %cst_6 : f32 to vector<128x128xf32>
    %11 = arith.subf %9, %10 : vector<128x128xf32>
    %12 = arith.select %8, %6, %11 : vector<128x128xi1>, vector<128x128xf32>
    %c0_7 = arith.constant 0 : index
    %c0_8 = arith.constant 0 : index
    %13 = vector.load %arg3[%c0_7, %c0_8] : memref<128x128xf32, #tpu.memory_space<vmem>>, vector<128x128xf32>
    %14 = arith.mulf %12, %13 : vector<128x128xf32>
    %15 = arith.truncf %14 : vector<128x128xf32> to vector<128x128xbf16>
    %c0_9 = arith.constant 0 : index
    %c0_10 = arith.constant 0 : index
    %16 = vector.load %arg7[%c0_9, %c0_10] : memref<128x128xbf16, #tpu.memory_space<vmem>>, vector<128x128xbf16>
    %cst_11 = arith.constant dense<0.000000e+00> : vector<128x128xf32>
    %17 = tpu.matmul %15, %16, %cst_11 {dimension_numbers = #tpu.dot_dimension_numbers<[1], [0], [0], [1], [0, 0, 1, 1], [], []>} : vector<128x128xbf16>, vector<128x128xbf16>, vector<128x128xf32> -> vector<128x128xf32>
    %c0_12 = arith.constant 0 : index
    %c0_13 = arith.constant 0 : index
    %18 = vector.load %arg8[%c0_12, %c0_13] : memref<1x128xf32, #tpu.memory_space<vmem>>, vector<1x128xf32>
    %19 = vector.broadcast %18 : vector<1x128xf32> to vector<128x128xf32>
    %20 = arith.addf %17, %19 : vector<128x128xf32>
    %cst_14 = arith.constant 0.000000e+00 : f32
    %21 = vector.broadcast %cst_14 : f32 to vector<128x128xf32>
    %22 = arith.cmpf ogt, %20, %21 : vector<128x128xf32>
    %23 = math.exp %20 : vector<128x128xf32>
    %cst_15 = arith.constant 1.000000e+00 : f32
    %24 = vector.broadcast %cst_15 : f32 to vector<128x128xf32>
    %25 = arith.subf %23, %24 : vector<128x128xf32>
    %26 = arith.select %22, %20, %25 : vector<128x128xi1>, vector<128x128xf32>
    %c0_16 = arith.constant 0 : index
    %c0_17 = arith.constant 0 : index
    %27 = vector.load %arg4[%c0_16, %c0_17] : memref<128x128xf32, #tpu.memory_space<vmem>>, vector<128x128xf32>
    %28 = arith.mulf %26, %27 : vector<128x128xf32>
    %29 = arith.truncf %28 : vector<128x128xf32> to vector<128x128xbf16>
    %c0_18 = arith.constant 0 : index
    %c0_19 = arith.constant 0 : index
    %30 = vector.load %arg9[%c0_18, %c0_19] : memref<128x128xbf16, #tpu.memory_space<vmem>>, vector<128x128xbf16>
    %cst_20 = arith.constant dense<0.000000e+00> : vector<128x128xf32>
    %31 = tpu.matmul %29, %30, %cst_20 {dimension_numbers = #tpu.dot_dimension_numbers<[1], [0], [0], [1], [0, 0, 1, 1], [], []>} : vector<128x128xbf16>, vector<128x128xbf16>, vector<128x128xf32> -> vector<128x128xf32>
    %c0_21 = arith.constant 0 : index
    %c0_22 = arith.constant 0 : index
    %32 = vector.load %arg10[%c0_21, %c0_22] : memref<1x128xf32, #tpu.memory_space<vmem>>, vector<1x128xf32>
    %33 = vector.broadcast %32 : vector<1x128xf32> to vector<128x128xf32>
    %34 = arith.addf %31, %33 : vector<128x128xf32>
    %35 = vector.extract_strided_slice %34 {offsets = [0, 32], sizes = [128, 1], strides = [1, 1]} : vector<128x128xf32> to vector<128x1xf32>
    %c0_23 = arith.constant 0 : index
    %c0_24 = arith.constant 0 : index
    %36 = vector.load %arg2[%c0_23, %c0_24] : memref<128x128xf32, #tpu.memory_space<vmem>>, vector<128x128xf32>
    %37 = arith.addf %34, %36 : vector<128x128xf32>
    %cst_25 = arith.constant dense<0xFF800000> : vector<128xf32>
    %38 = vector.multi_reduction <maximumf>, %37, %cst_25 [1] : vector<128x128xf32> to vector<128xf32>
    %39 = vector.shape_cast %38 : vector<128xf32> to vector<128x1xf32>
    %40 = vector.broadcast %39 : vector<128x1xf32> to vector<128x128xf32>
    %41 = arith.subf %37, %40 : vector<128x128xf32>
    %42 = math.exp %41 : vector<128x128xf32>
    %cst_26 = arith.constant dense<0.000000e+00> : vector<128xf32>
    %43 = vector.multi_reduction <add>, %42, %cst_26 [1] : vector<128x128xf32> to vector<128xf32>
    %44 = vector.shape_cast %43 : vector<128xf32> to vector<128x1xf32>
    %45 = tpu.reciprocal %44 {approx = true} : vector<128x1xf32> -> vector<128x1xf32>
    %46 = vector.broadcast %45 : vector<128x1xf32> to vector<128x128xf32>
    %47 = arith.mulf %42, %46 : vector<128x128xf32>
    %48 = tpu.iota {dimensions = array<i32: 1>} : vector<128x128xi32>
    %c32_i32 = arith.constant 32 : i32
    %49 = vector.broadcast %c32_i32 : i32 to vector<128x128xi32>
    %50 = arith.cmpi eq, %48, %49 : vector<128x128xi32>
    %51 = vector.shape_cast %35 : vector<128x1xf32> to vector<128x1xf32>
    %52 = vector.broadcast %51 : vector<128x1xf32> to vector<128x128xf32>
    %53 = arith.select %50, %52, %47 : vector<128x128xi1>, vector<128x128xf32>
    %c0_27 = arith.constant 0 : index
    %c0_28 = arith.constant 0 : index
    %54 = vector.load %arg11[%c0_27, %c0_28] : memref<128x128xf32, #tpu.memory_space<vmem>>, vector<128x128xf32>
    tpu.vector_store %arg11[%c0_27, %c0_28], %53 {strides = array<i32>} : memref<128x128xf32, #tpu.memory_space<vmem>>, vector<128x128xf32>,
    return
  }
  func.func @transform_0(%arg0: i32) -> (i32, i32) {
    %c0_i32 = arith.constant 0 : i32
    %c0_i32_0 = arith.constant 0 : i32
    return %arg0, %c0_i32 : i32, i32
  }
  func.func @transform_1(%arg0: i32) -> (i32, i32) {
    %c0_i32 = arith.constant 0 : i32
    %c0_i32_0 = arith.constant 0 : i32
    return %arg0, %c0_i32 : i32, i32
  }
  func.func @transform_2(%arg0: i32) -> (i32, i32) {
    %c0_i32 = arith.constant 0 : i32
    %c0_i32_0 = arith.constant 0 : i32
    return %arg0, %c0_i32 : i32, i32
  }
  func.func @transform_3(%arg0: i32) -> (i32, i32) {
    %c0_i32 = arith.constant 0 : i32
    %c0_i32_0 = arith.constant 0 : i32
    return %arg0, %c0_i32 : i32, i32
  }
  func.func @transform_4(%arg0: i32) -> (i32, i32) {
    %c0_i32 = arith.constant 0 : i32
    %c0_i32_0 = arith.constant 0 : i32
    %c0_i32_1 = arith.constant 0 : i32
    return %c0_i32, %c0_i32_0 : i32, i32
  }
  func.func @transform_5(%arg0: i32) -> (i32, i32) {
    %c0_i32 = arith.constant 0 : i32
    %c0_i32_0 = arith.constant 0 : i32
    %c0_i32_1 = arith.constant 0 : i32
    return %c0_i32, %c0_i32_0 : i32, i32
  }
  func.func @transform_6(%arg0: i32) -> (i32, i32) {
    %c0_i32 = arith.constant 0 : i32
    %c0_i32_0 = arith.constant 0 : i32
    %c0_i32_1 = arith.constant 0 : i32
    return %c0_i32, %c0_i32_0 : i32, i32
  }
  func.func @transform_7(%arg0: i32) -> (i32, i32) {
    %c0_i32 = arith.constant 0 : i32
    %c0_i32_0 = arith.constant 0 : i32
    %c0_i32_1 = arith.constant 0 : i32
    return %c0_i32, %c0_i32_0 : i32, i32
  }
  func.func @transform_8(%arg0: i32) -> (i32, i32) {
    %c0_i32 = arith.constant 0 : i32
    %c0_i32_0 = arith.constant 0 : i32
    %c0_i32_1 = arith.constant 0 : i32
    return %c0_i32, %c0_i32_0 : i32, i32
  }
  func.func @transform_9(%arg0: i32) -> (i32, i32) {
    %c0_i32 = arith.constant 0 : i32
    %c0_i32_0 = arith.constant 0 : i32
    %c0_i32_1 = arith.constant 0 : i32
    return %c0_i32, %c0_i32_0 : i32, i32
  }
  func.func @transform_10(%arg0: i32) -> (i32, i32) {
    %c0_i32 = arith.constant 0 : i32
    %c0_i32_0 = arith.constant 0 : i32
    return %arg0, %c0_i32 : i32, i32
  }
}

</mosaic_0001>

<llo_original>
// kernel: tpu_custom_call.1
$region0: #{tpu_custom_call.1}
  #allocation0 [shape = 'u32[]', space=smem, size = 0x4, offset = 0x4, fixed_abs, tag = 'smem constant byte address 0x4 - core index']
  #allocation1 [shape = 'u32[72,128]{1,0:T(1,128)}', space=vmem, size = 0x9000, scoped, tag = 'internal scratch']
  %s0 = inlined_call_operand.vmem [shape: f32[256,64], index: 0, kind: input, shape index: {}]
  %s1 = inlined_call_operand.vmem [shape: f32[256,128], index: 1, kind: input, shape index: {}]
  %s2 = inlined_call_operand.hbm [shape: f32[256,128], index: 2, kind: input, shape index: {}]
  %s3 = inlined_call_operand.hbm [shape: f32[256,128], index: 3, kind: input, shape index: {}]
  %s4 = inlined_call_operand.hbm [shape: bf16[64,128], index: 4, kind: input, shape index: {}]
  %s5 = inlined_call_operand.vmem [shape: f32[1,128], index: 5, kind: input, shape index: {}]
  %s6 = inlined_call_operand.vmem [shape: bf16[128,128], index: 6, kind: input, shape index: {}]
  %s7 = inlined_call_operand.vmem [shape: f32[1,128], index: 7, kind: input, shape index: {}]
  %s8 = inlined_call_operand.vmem [shape: bf16[128,128], index: 8, kind: input, shape index: {}]
  %s9 = inlined_call_operand.vmem [shape: f32[1,128], index: 9, kind: input, shape index: {}]
  %s10 = inlined_call_operand.hbm [shape: f32[256,128], index: 10, kind: output, shape index: {}]
  %s11 = sld [smem:[#allocation0]]
  $region85: #{tpu_custom_call.1} parent=0
    _
  %s13 = ssub.s32 1, %s11
  %s14 = scalar_select 0, %s13, %s11
  $region1: #{tpu_custom_call.1} parent=0
    #allocation2 [shape = 'u8[131072]{0}', space=vmem, size = 0x20000, scoped, tag = 'input window, operand 2']
    #allocation3 [shape = 's32[2]{0}', space=sflag, size = 0x8, scoped, tag = 'scoped memory for tpu_custom_call.1']
    #allocation4 [shape = 's32[2]{0}', space=sflag, size = 0x8, scoped, tag = 'scoped memory for tpu_custom_call.1']
    #allocation5 [shape = 'u8[131072]{0}', space=vmem, size = 0x20000, scoped, tag = 'input window, operand 3']
    #allocation6 [shape = 's32[2]{0}', space=sflag, size = 0x8, scoped, tag = 'scoped memory for tpu_custom_call.1']
    #allocation7 [shape = 'u8[16384]{0}', space=vmem, size = 0x4000, scoped, tag = 'input window, operand 4, single buffered']
    #allocation8 [shape = 'u8[131072]{0}', space=vmem, size = 0x20000, scoped, tag = 'output window, operand 0']
    %15 = vsyncpa [#allocation3], 0
    %s16 = scalar_lea.sflag [#allocation3], 1
    %17 = vsyncpa %s16, 0
    %18 = vsyncpa [#allocation6], 0
    %s19 = scalar_lea.sflag [#allocation6], 1
    %20 = vsyncpa %s19, 0
    %21 = vsyncpa [#allocation4], 0
    %s22 = scalar_lea.sflag [#allocation4], 1
    %23 = vsyncpa %s22, 0
    loop: start=0, step=1, limit=4
    $region2: #{tpu_custom_call.1} parent=1 // loop_pre_header
      _
    $region3: #{tpu_custom_call.1} parent=1 // loop_header
      %s25 = sphi 0, %s29
      %p26 = scmp.ge.s32.totalorder %s25, 4
      %s35 = sphi 0, %s37
      %s38 = sphi 0, %s35
      %s39 = sphi 0, %s38
      %s55 = sphi 0, %s39
      %s61 = sphi 0, %s63
      %s64 = sphi 0, %s61
      %s65 = sphi 0, %s64
      %s81 = sphi 0, %s65
      %s87 = sphi 0, %s89
      %s90 = sphi 0, %s87
      %s91 = sphi 0, %s90
      %s107 = sphi 0, %s91
      %s113 = sphi 0, %s115
      %s116 = sphi 0, %s113
      %s117 = sphi 0, %s116
      %s133 = sphi 0, %s117
      %s137 = sphi 0, %s137
      %s139 = sphi 0, %s137
      %s140 = sphi 0, %s139
      %s154 = sphi 0, %s140
      %s158 = sphi 0, %s158
      %s160 = sphi 0, %s158
      %s161 = sphi 0, %s160
      %s175 = sphi 0, %s161
      %s179 = sphi 0, %s179
      %s181 = sphi 0, %s179
      %s182 = sphi 0, %s181
      %s196 = sphi 0, %s182
      %s200 = sphi 0, %s200
      %s202 = sphi 0, %s200
      %s203 = sphi 0, %s202
      %s217 = sphi 0, %s203
      %s221 = sphi 0, %s221
      %s223 = sphi 0, %s221
      %s224 = sphi 0, %s223
      %s238 = sphi 0, %s224
      %s242 = sphi 0, %s242
      %s244 = sphi 0, %s242
      %s245 = sphi 0, %s244
      %s259 = sphi 0, %s245
      %s265 = sphi 0, %s267
      %s268 = sphi 0, %s265
      %s269 = sphi 0, %s268
      %s285 = sphi 0, %s269
    $region4: #{tpu_custom_call.1} parent=1 // loop_header_branch
      %28 = sbr.rel (%p26) target = $region8
    $region5: #{tpu_custom_call.1} parent=1 // loop_body
      %s30 = ssub.s32 %s25, 1
      %s31 = ssub.s32 %s25, 2
      %s32 = sadd.s32 %s25, 1
      %s33 = ssub.s32 %s25, %s32
      %p34 = scmp.eq.s32.totalorder %s33, 0
      %s36 = sadd.s32 %s35, 1
      %s37 = scalar_select %p34, %s35, %s36
      %p40 = pneg %p34
      %p41 = scmp.eq.s32.totalorder %s25, 1
      %p42 = por %p40, %p41
      %p43 = scmp.ne.s32.totalorder %s35, %s38
      %p44 = scmp.eq.s32.totalorder %s25, 0
      %p45 = por %p43, %p44
      %p46 = scmp.ne.s32.totalorder %s35, %s38
      %p47 = scmp.eq.s32.totalorder %s30, 1
      %p48 = por %p46, %p47
      %p49 = scmp.ne.s32.totalorder %s38, %s39
      %p50 = scmp.eq.s32.totalorder %s30, 0
      %p51 = por %p49, %p50
      %p52 = scmp.ne.s32.totalorder %s38, %s39
      %p53 = scmp.eq.s32.totalorder %s31, 1
      %p54 = por %p52, %p53
      %p56 = scmp.ne.s32.totalorder %s39, %s55
      %p57 = scmp.eq.s32.totalorder %s31, 0
      %p58 = por %p56, %p57
      %s59 = ssub.s32 %s25, %s32
      %p60 = scmp.eq.s32.totalorder %s59, 0
      %s62 = sadd.s32 %s61, 1
      %s63 = scalar_select %p60, %s61, %s62
      %p66 = pneg %p60
      %p67 = scmp.eq.s32.totalorder %s25, 1
      %p68 = por %p66, %p67
      %p69 = scmp.ne.s32.totalorder %s61, %s64
      %p70 = scmp.eq.s32.totalorder %s25, 0
      %p71 = por %p69, %p70
      %p72 = scmp.ne.s32.totalorder %s61, %s64
      %p73 = scmp.eq.s32.totalorder %s30, 1
      %p74 = por %p72, %p73
      %p75 = scmp.ne.s32.totalorder %s64, %s65
      %p76 = scmp.eq.s32.totalorder %s30, 0
      %p77 = por %p75, %p76
      %p78 = scmp.ne.s32.totalorder %s64, %s65
      %p79 = scmp.eq.s32.totalorder %s31, 1
      %p80 = por %p78, %p79
      %p82 = scmp.ne.s32.totalorder %s65, %s81
      %p83 = scmp.eq.s32.totalorder %s31, 0
      %p84 = por %p82, %p83
      %s85 = ssub.s32 %s25, %s32
      %p86 = scmp.eq.s32.totalorder %s85, 0
      %s88 = sadd.s32 %s87, 1
      %s89 = scalar_select %p86, %s87, %s88
      %p92 = pneg %p86
      %p93 = scmp.eq.s32.totalorder %s25, 1
      %p94 = por %p92, %p93
      %p95 = scmp.ne.s32.totalorder %s87, %s90
      %p96 = scmp.eq.s32.totalorder %s25, 0
      %p97 = por %p95, %p96
      %p98 = scmp.ne.s32.totalorder %s87, %s90
      %p99 = scmp.eq.s32.totalorder %s30, 1
      %p100 = por %p98, %p99
      %p101 = scmp.ne.s32.totalorder %s90, %s91
      %p102 = scmp.eq.s32.totalorder %s30, 0
      %p103 = por %p101, %p102
      %p104 = scmp.ne.s32.totalorder %s90, %s91
      %p105 = scmp.eq.s32.totalorder %s31, 1
      %p106 = por %p104, %p105
      %p108 = scmp.ne.s32.totalorder %s91, %s107
      %p109 = scmp.eq.s32.totalorder %s31, 0
      %p110 = por %p108, %p109
      %s111 = ssub.s32 %s25, %s32
      %p112 = scmp.eq.s32.totalorder %s111, 0
      %s114 = sadd.s32 %s113, 1
      %s115 = scalar_select %p112, %s113, %s114
      %p118 = pneg %p112
      %p119 = scmp.eq.s32.totalorder %s25, 1
      %p120 = por %p118, %p119
      %p121 = scmp.ne.s32.totalorder %s113, %s116
      %p122 = scmp.eq.s32.totalorder %s25, 0
      %p123 = por %p121, %p122
      %p124 = scmp.ne.s32.totalorder %s113, %s116
      %p125 = scmp.eq.s32.totalorder %s30, 1
      %p126 = por %p124, %p125
      %p127 = scmp.ne.s32.totalorder %s116, %s117
      %p128 = scmp.eq.s32.totalorder %s30, 0
      %p129 = por %p127, %p128
      %p130 = scmp.ne.s32.totalorder %s116, %s117
      %p131 = scmp.eq.s32.totalorder %s31, 1
      %p132 = por %p130, %p131
      %p134 = scmp.ne.s32.totalorder %s117, %s133
      %p135 = scmp.eq.s32.totalorder %s31, 0
      %p136 = por %p134, %p135
      %s138 = sadd.s32 %s137, 1
      %p141 = scmp.eq.s32.totalorder %s25, 1
      %p142 = scmp.ne.s32.totalorder %s137, %s139
      %p143 = scmp.eq.s32.totalorder %s25, 0
      %p144 = por %p142, %p143
      %p145 = scmp.ne.s32.totalorder %s137, %s139
      %p146 = scmp.eq.s32.totalorder %s30, 1
      %p147 = por %p145, %p146
      %p148 = scmp.ne.s32.totalorder %s139, %s140
      %p149 = scmp.eq.s32.totalorder %s30, 0
      %p150 = por %p148, %p149
      %p151 = scmp.ne.s32.totalorder %s139, %s140
      %p152 = scmp.eq.s32.totalorder %s31, 1
      %p153 = por %p151, %p152
      %p155 = scmp.ne.s32.totalorder %s140, %s154
      %p156 = scmp.eq.s32.totalorder %s31, 0
      %p157 = por %p155, %p156
      %s159 = sadd.s32 %s158, 1
      %p162 = scmp.eq.s32.totalorder %s25, 1
      %p163 = scmp.ne.s32.totalorder %s158, %s160
      %p164 = scmp.eq.s32.totalorder %s25, 0
      %p165 = por %p163, %p164
      %p166 = scmp.ne.s32.totalorder %s158, %s160
      %p167 = scmp.eq.s32.totalorder %s30, 1
      %p168 = por %p166, %p167
      %p169 = scmp.ne.s32.totalorder %s160, %s161
      %p170 = scmp.eq.s32.totalorder %s30, 0
      %p171 = por %p169, %p170
      %p172 = scmp.ne.s32.totalorder %s160, %s161
      %p173 = scmp.eq.s32.totalorder %s31, 1
      %p174 = por %p172, %p173
      %p176 = scmp.ne.s32.totalorder %s161, %s175
      %p177 = scmp.eq.s32.totalorder %s31, 0
      %p178 = por %p176, %p177
      %s180 = sadd.s32 %s179, 1
      %p183 = scmp.eq.s32.totalorder %s25, 1
      %p184 = scmp.ne.s32.totalorder %s179, %s181
      %p185 = scmp.eq.s32.totalorder %s25, 0
      %p186 = por %p184, %p185
      %p187 = scmp.ne.s32.totalorder %s179, %s181
      %p188 = scmp.eq.s32.totalorder %s30, 1
      %p189 = por %p187, %p188
      %p190 = scmp.ne.s32.totalorder %s181, %s182
      %p191 = scmp.eq.s32.totalorder %s30, 0
      %p192 = por %p190, %p191
      %p193 = scmp.ne.s32.totalorder %s181, %s182
      %p194 = scmp.eq.s32.totalorder %s31, 1
      %p195 = por %p193, %p194
      %p197 = scmp.ne.s32.totalorder %s182, %s196
      %p198 = scmp.eq.s32.totalorder %s31, 0
      %p199 = por %p197, %p198
      %s201 = sadd.s32 %s200, 1
      %p204 = scmp.eq.s32.totalorder %s25, 1
      %p205 = scmp.ne.s32.totalorder %s200, %s202
      %p206 = scmp.eq.s32.totalorder %s25, 0
      %p207 = por %p205, %p206
      %p208 = scmp.ne.s32.totalorder %s200, %s202
      %p209 = scmp.eq.s32.totalorder %s30, 1
      %p210 = por %p208, %p209
      %p211 = scmp.ne.s32.totalorder %s202, %s203
      %p212 = scmp.eq.s32.totalorder %s30, 0
      %p213 = por %p211, %p212
      %p214 = scmp.ne.s32.totalorder %s202, %s203
      %p215 = scmp.eq.s32.totalorder %s31, 1
      %p216 = por %p214, %p215
      %p218 = scmp.ne.s32.totalorder %s203, %s217
      %p219 = scmp.eq.s32.totalorder %s31, 0
      %p220 = por %p218, %p219
      %s222 = sadd.s32 %s221, 1
      %p225 = scmp.eq.s32.totalorder %s25, 1
      %p226 = scmp.ne.s32.totalorder %s221, %s223
      %p227 = scmp.eq.s32.totalorder %s25, 0
      %p228 = por %p226, %p227
      %p229 = scmp.ne.s32.totalorder %s221, %s223
      %p230 = scmp.eq.s32.totalorder %s30, 1
      %p231 = por %p229, %p230
      %p232 = scmp.ne.s32.totalorder %s223, %s224
      %p233 = scmp.eq.s32.totalorder %s30, 0
      %p234 = por %p232, %p233
      %p235 = scmp.ne.s32.totalorder %s223, %s224
      %p236 = scmp.eq.s32.totalorder %s31, 1
      %p237 = por %p235, %p236
      %p239 = scmp.ne.s32.totalorder %s224, %s238
      %p240 = scmp.eq.s32.totalorder %s31, 0
      %p241 = por %p239, %p240
      %s243 = sadd.s32 %s242, 1
      %p246 = scmp.eq.s32.totalorder %s25, 1
      %p247 = scmp.ne.s32.totalorder %s242, %s244
      %p248 = scmp.eq.s32.totalorder %s25, 0
      %p249 = por %p247, %p248
      %p250 = scmp.ne.s32.totalorder %s242, %s244
      %p251 = scmp.eq.s32.totalorder %s30, 1
      %p252 = por %p250, %p251
      %p253 = scmp.ne.s32.totalorder %s244, %s245
      %p254 = scmp.eq.s32.totalorder %s30, 0
      %p255 = por %p253, %p254
      %p256 = scmp.ne.s32.totalorder %s244, %s245
      %p257 = scmp.eq.s32.totalorder %s31, 1
      %p258 = por %p256, %p257
      %p260 = scmp.ne.s32.totalorder %s245, %s259
      %p261 = scmp.eq.s32.totalorder %s31, 0
      %p262 = por %p260, %p261
      %s263 = ssub.s32 %s25, %s32
      %p264 = scmp.eq.s32.totalorder %s263, 0
      %s266 = sadd.s32 %s265, 1
      %s267 = scalar_select %p264, %s265, %s266
      %p270 = pneg %p264
      %p271 = scmp.eq.s32.totalorder %s25, 1
      %p272 = por %p270, %p271
      %p273 = scmp.ne.s32.totalorder %s265, %s268
      %p274 = scmp.eq.s32.totalorder %s25, 0
      %p275 = por %p273, %p274
      %p276 = scmp.ne.s32.totalorder %s265, %s268
      %p277 = scmp.eq.s32.totalorder %s30, 1
      %p278 = por %p276, %p277
      %p279 = scmp.ne.s32.totalorder %s268, %s269
      %p280 = scmp.eq.s32.totalorder %s30, 0
      %p281 = por %p279, %p280
      %p282 = scmp.ne.s32.totalorder %s268, %s269
      %p283 = scmp.eq.s32.totalorder %s31, 1
      %p284 = por %p282, %p283
      %p286 = scmp.ne.s32.totalorder %s269, %s285
      %p287 = scmp.eq.s32.totalorder %s31, 0
      %p288 = por %p286, %p287
      %p289 = scmp.le.s32.totalorder 1, %s25
      %p290 = scmp.lt.s32.totalorder %s25, 3
      %p291 = pnand %p289, %p290
      %p292 = pneg %p291
      // Predicated region
      $region9: #{tpu_custom_call.1} parent=5 // pred_check
        _
      $region10: #{tpu_custom_call.1} parent=5 // pred_check_branch
        %294 = sbr.rel (%p291) target = $region12
      $region11: #{tpu_custom_call.1} parent=5 // pred_region
        %s295 = ssub.s32 %s25, 1
        // Predicated region
        $region13: #{tpu_custom_call.1} parent=11 // pred_check
          %p296 = pneg %p150
        $region14: #{tpu_custom_call.1} parent=11 // pred_check_branch
          %298 = sbr.rel (%p296) target = $region16
        $region15: #{tpu_custom_call.1} parent=11 // pred_region
          %300 = vsyncadd [#allocation6], 0
          %s301 = sshll.u32 %s4, 4
          %s302 = int_to_ptr.hbm [resolvable:$true] %s301
          %s303 = sshll.u32 [#allocation7], 4
          %s304 = int_to_ptr.vmem [resolvable:$true] %s303
          %309 = dma.hbm_to_vmem [thread:$0]  %s302, 512, %s304, [#allocation6], 64, 64, 4
        $region16: #{tpu_custom_call.1} parent=11 // pred_fallthru
          _
        // Predicated region
        $region17: #{tpu_custom_call.1} parent=11 // pred_check
          %p310 = pneg %p171
        $region18: #{tpu_custom_call.1} parent=11 // pred_check_branch
          %312 = sbr.rel (%p310) target = $region20
        $region19: #{tpu_custom_call.1} parent=11 // pred_region
          _
        $region20: #{tpu_custom_call.1} parent=11 // pred_fallthru
          _
        // Predicated region
        $region21: #{tpu_custom_call.1} parent=11 // pred_check
          %p313 = pneg %p192
        $region22: #{tpu_custom_call.1} parent=11 // pred_check_branch
          %315 = sbr.rel (%p313) target = $region24
        $region23: #{tpu_custom_call.1} parent=11 // pred_region
          _
        $region24: #{tpu_custom_call.1} parent=11 // pred_fallthru
          _
        // Predicated region
        $region25: #{tpu_custom_call.1} parent=11 // pred_check
          %p316 = pneg %p213
        $region26: #{tpu_custom_call.1} parent=11 // pred_check_branch
          %318 = sbr.rel (%p316) target = $region28
        $region27: #{tpu_custom_call.1} parent=11 // pred_region
          _
        $region28: #{tpu_custom_call.1} parent=11 // pred_fallthru
          _
        // Predicated region
        $region29: #{tpu_custom_call.1} parent=11 // pred_check
          %p319 = pneg %p234
        $region30: #{tpu_custom_call.1} parent=11 // pred_check_branch
          %321 = sbr.rel (%p319) target = $region32
        $region31: #{tpu_custom_call.1} parent=11 // pred_region
          _
        $region32: #{tpu_custom_call.1} parent=11 // pred_fallthru
          _
        // Predicated region
        $region33: #{tpu_custom_call.1} parent=11 // pred_check
          %p322 = pneg %p255
        $region34: #{tpu_custom_call.1} parent=11 // pred_check_branch
          %324 = sbr.rel (%p322) target = $region36
        $region35: #{tpu_custom_call.1} parent=11 // pred_region
          _
        $region36: #{tpu_custom_call.1} parent=11 // pred_fallthru
          _
      $region12: #{tpu_custom_call.1} parent=5 // pred_fallthru
        _
      %p325 = scmp.lt.s32.totalorder %s25, 2
      // Predicated region
      $region37: #{tpu_custom_call.1} parent=5 // pred_check
        %p326 = pneg %p325
      $region38: #{tpu_custom_call.1} parent=5 // pred_check_branch
        %328 = sbr.rel (%p326) target = $region40
      $region39: #{tpu_custom_call.1} parent=5 // pred_region
        // Predicated region
        $region41: #{tpu_custom_call.1} parent=39 // pred_check
          %p329 = pneg %p45
        $region42: #{tpu_custom_call.1} parent=39 // pred_check_branch
          %331 = sbr.rel (%p329) target = $region44
        $region43: #{tpu_custom_call.1} parent=39 // pred_region
          %s332 = smul.u32 16, %s25
          %p333 = scmp.lt.s32.totalorder %s332, 31
          %s334 = scalar_select %p333, %s332, 31
          %s335 = smul.addr %s334, 8
          %s336 = scalar_lea.vmem %s0, %s335
          %s337 = smul.u32 16, %s25
        $region44: #{tpu_custom_call.1} parent=39 // pred_fallthru
          _
        // Predicated region
        $region45: #{tpu_custom_call.1} parent=39 // pred_check
          %p338 = pneg %p71
        $region46: #{tpu_custom_call.1} parent=39 // pred_check_branch
          %340 = sbr.rel (%p338) target = $region48
        $region47: #{tpu_custom_call.1} parent=39 // pred_region
          %s341 = smul.u32 16, %s25
          %p342 = scmp.lt.s32.totalorder %s341, 31
          %s343 = scalar_select %p342, %s341, 31
          %s344 = smul.addr %s343, 8
          %s345 = scalar_lea.vmem %s1, %s344
          %s346 = smul.u32 16, %s25
        $region48: #{tpu_custom_call.1} parent=39 // pred_fallthru
          _
        // Predicated region
        $region49: #{tpu_custom_call.1} parent=39 // pred_check
          %p347 = pneg %p97
        $region50: #{tpu_custom_call.1} parent=39 // pred_check_branch
          %349 = sbr.rel (%p347) target = $region52
        $region51: #{tpu_custom_call.1} parent=39 // pred_region
          %s350 = sand.u32 %s87, 1
          %s351 = scalar_lea.sflag [#allocation3], %s350
          %s352 = sand.u32 %s87, 1
          %s353 = smul.addr %s352, 128
          %s354 = scalar_lea.vmem [#allocation2], %s353
          %s355 = smul.u32 16, %s25
          %357 = vsyncadd %s351, 0
          %s358 = smul.addr %s355, 8
          %s359 = scalar_lea.hbm %s2, %s358
          %s360 = sshll.u32 %s359, 4
          %s361 = int_to_ptr.hbm [resolvable:$true] %s360
          %s362 = sshll.u32 %s354, 4
          %s363 = int_to_ptr.vmem [resolvable:$true] %s362
          %368 = dma.hbm_to_vmem [thread:$0]  %s361, 2048, %s363, %s351, 128, 128, 8
        $region52: #{tpu_custom_call.1} parent=39 // pred_fallthru
          _
        // Predicated region
        $region53: #{tpu_custom_call.1} parent=39 // pred_check
          %p369 = pneg %p123
        $region54: #{tpu_custom_call.1} parent=39 // pred_check_branch
          %371 = sbr.rel (%p369) target = $region56
        $region55: #{tpu_custom_call.1} parent=39 // pred_region
          %s372 = sand.u32 %s25, 1
          %s373 = scalar_lea.sflag [#allocation6], %s372
          %s374 = sand.u32 %s113, 1
          %s375 = smul.addr %s374, 128
          %s376 = scalar_lea.vmem [#allocation5], %s375
          %s377 = smul.u32 16, %s25
          %379 = vsyncadd %s373, 0
          %s380 = smul.addr %s377, 8
          %s381 = scalar_lea.hbm %s3, %s380
          %s382 = sshll.u32 %s381, 4
          %s383 = int_to_ptr.hbm [resolvable:$true] %s382
          %s384 = sshll.u32 %s376, 4
          %s385 = int_to_ptr.vmem [resolvable:$true] %s384
          %390 = dma.hbm_to_vmem [thread:$0]  %s383, 2048, %s385, %s373, 128, 128, 8
        $region56: #{tpu_custom_call.1} parent=39 // pred_fallthru
          _
      $region40: #{tpu_custom_call.1} parent=5 // pred_fallthru
        _
      %p391 = scmp.le.s32.totalorder 1, %s25
      %p392 = scmp.lt.s32.totalorder %s25, 3
      %p393 = pnand %p391, %p392
      %p394 = pneg %p393
      // Predicated region
      $region57: #{tpu_custom_call.1} parent=5 // pred_check
        _
      $region58: #{tpu_custom_call.1} parent=5 // pred_check_branch
        %396 = sbr.rel (%p393) target = $region60
      $region59: #{tpu_custom_call.1} parent=5 // pred_region
        %s397 = ssub.s32 %s25, 1
        %s398 = sand.u32 %s90, 1
        %s399 = scalar_lea.sflag [#allocation3], %s398
        %s400 = sand.u32 %s90, 1
        %s401 = smul.addr %s400, 128
        %s402 = scalar_lea.vmem [#allocation2], %s401
        // Predicated region
        $region61: #{tpu_custom_call.1} parent=59 // pred_check
          %p403 = pneg %p103
        $region62: #{tpu_custom_call.1} parent=59 // pred_check_branch
          %405 = sbr.rel (%p403) target = $region64
        $region63: #{tpu_custom_call.1} parent=59 // pred_region
          %407 = dma.done %s399, 2048
        $region64: #{tpu_custom_call.1} parent=59 // pred_fallthru
          _
        %s408 = sand.u32 %s30, 1
        %s409 = scalar_lea.sflag [#allocation6], %s408
        %s410 = sand.u32 %s116, 1
        %s411 = smul.addr %s410, 128
        %s412 = scalar_lea.vmem [#allocation5], %s411
        // Predicated region
        $region65: #{tpu_custom_call.1} parent=59 // pred_check
          %p413 = pneg %p129
        $region66: #{tpu_custom_call.1} parent=59 // pred_check_branch
          %415 = sbr.rel (%p413) target = $region68
        $region67: #{tpu_custom_call.1} parent=59 // pred_region
          %417 = dma.done %s409, 2048
        $region68: #{tpu_custom_call.1} parent=59 // pred_fallthru
          _
        // Predicated region
        $region69: #{tpu_custom_call.1} parent=59 // pred_check
          %p418 = pneg %p150
        $region70: #{tpu_custom_call.1} parent=59 // pred_check_branch
          %420 = sbr.rel (%p418) target = $region72
        $region71: #{tpu_custom_call.1} parent=59 // pred_region
          %422 = dma.done [#allocation6], 512
        $region72: #{tpu_custom_call.1} parent=59 // pred_fallthru
          _
        %s423 = smul.u32 16, %s30
        %p424 = scmp.lt.s32.totalorder %s423, 31
        %s425 = scalar_select %p424, %s423, 31
        %s426 = smul.addr %s425, 8
        %s427 = scalar_lea.vmem %s0, %s426
        %p428 = pneg %p51
        %p429 = pneg %p48
        %s430 = smul.u32 16, %s30
        %p431 = scmp.lt.s32.totalorder %s430, 31
        %s432 = scalar_select %p431, %s430, 31
        %s433 = smul.addr %s432, 8
        %s434 = scalar_lea.vmem %s1, %s433
        %p435 = pneg %p77
        %p436 = pneg %p74
        %s437 = sand.u32 %s90, 1
        %s438 = scalar_lea.sflag [#allocation3], %s437
        %s439 = sand.u32 %s90, 1
        %s440 = smul.addr %s439, 128
        %s441 = scalar_lea.vmem [#allocation2], %s440
        %p442 = pneg %p103
        %p443 = pneg %p100
        %s444 = sand.u32 %s30, 1
        %s445 = scalar_lea.sflag [#allocation6], %s444
        %s446 = sand.u32 %s116, 1
        %s447 = smul.addr %s446, 128
        %s448 = scalar_lea.vmem [#allocation5], %s447
        %p449 = pneg %p129
        %p450 = pneg %p126
        %p451 = pneg %p150
        %p452 = pneg %p147
        %p453 = pneg %p171
        %p454 = pneg %p168
        %p455 = pneg %p192
        %p456 = pneg %p189
        %p457 = pneg %p213
        %p458 = pneg %p210
        %p459 = pneg %p234
        %p460 = pneg %p231
        %p461 = pneg %p255
        %p462 = pneg %p252
        %p463 = pneg %p281
        %p464 = pneg %p278
        %s465 = sand.u32 %s268, 1
        %s466 = scalar_lea.sflag [#allocation4], %s465
        %s467 = sand.u32 %s268, 1
        %s468 = smul.addr %s467, 128
        %s469 = scalar_lea.vmem [#allocation8], %s468
        %s470 = smul.u32 16, %s30
        %p471 = scmp.lt.s32.totalorder %s470, 31
        %s472 = scalar_select %p471, %s470, 31
        %s473 = smul.addr %s472, 8
        %s474 = scalar_lea.vmem %s0, %s473
        %s475 = smul.u32 16, %s30
        %s476 = smul.u32 16, %s30
        %p477 = scmp.lt.s32.totalorder %s476, 31
        %s478 = scalar_select %p477, %s476, 31
        %s479 = smul.addr %s478, 8
        %s480 = scalar_lea.vmem %s1, %s479
        %s481 = smul.u32 16, %s30
        %s482 = smul.u32 16, %s30
        %s483 = smul.u32 16, %s30
        %s484 = smul.u32 16, %s30
        %v486 = vld [vmem:[%s474] sm:$0xff]
        %v487 = vld [vmem:[%s474 + $0x8] sm:$0xff]
        %v488 = vld [vmem:[%s474 + $0x10] sm:$0xff]
        %v489 = vld [vmem:[%s474 + $0x18] sm:$0xff]
        %v490 = vld [vmem:[%s474 + $0x20] sm:$0xff]
        %v491 = vld [vmem:[%s474 + $0x28] sm:$0xff]
        %v492 = vld [vmem:[%s474 + $0x30] sm:$0xff]
        %v493 = vld [vmem:[%s474 + $0x38] sm:$0xff]
        %v494 = vld [vmem:[%s474 + $0x40] sm:$0xff]
        %v495 = vld [vmem:[%s474 + $0x48] sm:$0xff]
        %v496 = vld [vmem:[%s474 + $0x50] sm:$0xff]
        %v497 = vld [vmem:[%s474 + $0x58] sm:$0xff]
        %v498 = vld [vmem:[%s474 + $0x60] sm:$0xff]
        %v499 = vld [vmem:[%s474 + $0x68] sm:$0xff]
        %v500 = vld [vmem:[%s474 + $0x70] sm:$0xff]
        %v501 = vld [vmem:[%s474 + $0x78] sm:$0xff]
        %v502 = vpack.c.bf16 %v487, %v486
        %v503 = vpack.c.bf16 %v489, %v488
        %v504 = vpack.c.bf16 %v491, %v490
        %v505 = vpack.c.bf16 %v493, %v492
        %v506 = vpack.c.bf16 %v495, %v494
        %v507 = vpack.c.bf16 %v497, %v496
        %v508 = vpack.c.bf16 %v499, %v498
        %v509 = vpack.c.bf16 %v501, %v500
        %v510 = vld [vmem:[#allocation7] sm:$0xf]
        %v511 = vld [vmem:[#allocation7 + $0x4] sm:$0xf]
        %v512 = vld [vmem:[#allocation7 + $0x8] sm:$0xf]
        %v513 = vld [vmem:[#allocation7 + $0xc] sm:$0xf]
        %v514 = vld [vmem:[#allocation7 + $0x10] sm:$0xf]
        %v515 = vld [vmem:[#allocation7 + $0x14] sm:$0xf]
        %v516 = vld [vmem:[#allocation7 + $0x18] sm:$0xf]
        %v517 = vld [vmem:[#allocation7 + $0x1c] sm:$0xf]
        %v518 = vld [vmem:[%s5] sm:$0x1]
        %v520 = vperm.slane %v518, 0
        %v530 = vunpack.c.l.b16 %v510
        %v531 = vunpack.c.l.b16 %v511
        %v532 = vunpack.c.l.b16 %v512
        %v533 = vunpack.c.l.b16 %v513
        %v534 = vunpack.c.l.b16 %v514
        %v535 = vunpack.c.l.b16 %v515
        %v536 = vunpack.c.l.b16 %v516
        %v537 = vunpack.c.l.b16 %v517
        %v538 = vpack.c.b16 %v531, %v530
        %v539 = vpack.c.b16 %v533, %v532
        %v540 = vpack.c.b16 %v535, %v534
        %v541 = vpack.c.b16 %v537, %v536
        %vm546 = vcmask 523264
        %v548 = vsel %vm546, %v502, 0
        %v551 = vsel %vm546, %v503, 0
        %v554 = vsel %vm546, %v504, 0
        %v557 = vsel %vm546, %v505, 0
        %v560 = vsel %vm546, %v506, 0
        %v563 = vsel %vm546, %v507, 0
        %v566 = vsel %vm546, %v508, 0
        %v569 = vsel %vm546, %v509, 0
        %571 = vmatpush.bf16.msra.mxu0 0
        %572 = vmatpush.bf16.msra.mxu0 0
        %573 = vmatpush.bf16.msra.mxu0 0
        %574 = vmatpush.bf16.msra.mxu0 0
        %575 = vmatpush.bf16.msra.mxu0 %v541
        %576 = vmatpush.bf16.msra.mxu0 %v540
        %577 = vmatpush.bf16.msra.mxu0 %v539
        %578 = vmatpush.bf16.msra.mxu0 %v538
        %579 = vmatmul.bf16.gmra.mxu0 %v548
        %v580 = vpop.f32.mrf.mxu0
        %v581 = vadd.f32 %v520, %v580
        %v582 = vpop.f32.mrf.mxu0
        %v583 = vadd.f32 %v520, %v582
        %584 = vmatmul.bf16.gmra.mxu0 %v551
        %v585 = vpop.f32.mrf.mxu0
        %v586 = vadd.f32 %v520, %v585
        %v587 = vpop.f32.mrf.mxu0
        %v588 = vadd.f32 %v520, %v587
        %589 = vmatmul.bf16.gmra.mxu0 %v554
        %v590 = vpop.f32.mrf.mxu0
        %v591 = vadd.f32 %v520, %v590
        %v592 = vpop.f32.mrf.mxu0
        %v593 = vadd.f32 %v520, %v592
        %594 = vmatmul.bf16.gmra.mxu0 %v557
        %v595 = vpop.f32.mrf.mxu0
        %v596 = vadd.f32 %v520, %v595
        %v597 = vpop.f32.mrf.mxu0
        %v598 = vadd.f32 %v520, %v597
        %599 = vmatmul.bf16.gmra.mxu0 %v560
        %v600 = vpop.f32.mrf.mxu0
        %v601 = vadd.f32 %v520, %v600
        %v602 = vpop.f32.mrf.mxu0
        %v603 = vadd.f32 %v520, %v602
        %604 = vmatmul.bf16.gmra.mxu0 %v563
        %v605 = vpop.f32.mrf.mxu0
        %v606 = vadd.f32 %v520, %v605
        %v607 = vpop.f32.mrf.mxu0
        %v608 = vadd.f32 %v520, %v607
        %609 = vmatmul.bf16.gmra.mxu0 %v566
        %v610 = vpop.f32.mrf.mxu0
        %v611 = vadd.f32 %v520, %v610
        %v612 = vpop.f32.mrf.mxu0
        %v613 = vadd.f32 %v520, %v612
        %614 = vmatmul.bf16.gmra.mxu0 %v569
        %v615 = vpop.f32.mrf.mxu0
        %v616 = vadd.f32 %v520, %v615
        %v617 = vpop.f32.mrf.mxu0
        %v618 = vadd.f32 %v520, %v617
        %619 = vdwg.mxu0
        %vm620 = vcmp.gt.f32.partialorder %v581, 0.0
        %vm621 = vcmp.gt.f32.partialorder %v583, 0.0
        %vm622 = vcmp.gt.f32.partialorder %v586, 0.0
        %vm623 = vcmp.gt.f32.partialorder %v588, 0.0
        %vm624 = vcmp.gt.f32.partialorder %v591, 0.0
        %vm625 = vcmp.gt.f32.partialorder %v593, 0.0
        %vm626 = vcmp.gt.f32.partialorder %v596, 0.0
        %vm627 = vcmp.gt.f32.partialorder %v598, 0.0
        %vm628 = vcmp.gt.f32.partialorder %v601, 0.0
        %vm629 = vcmp.gt.f32.partialorder %v603, 0.0
        %vm630 = vcmp.gt.f32.partialorder %v606, 0.0
        %vm631 = vcmp.gt.f32.partialorder %v608, 0.0
        %vm632 = vcmp.gt.f32.partialorder %v611, 0.0
        %vm633 = vcmp.gt.f32.partialorder %v613, 0.0
        %vm634 = vcmp.gt.f32.partialorder %v616, 0.0
        %vm635 = vcmp.gt.f32.partialorder %v618, 0.0
        %v636 = vmul.f32 %v581, 1.442695
        %v637 = vpow.pop %v636
        %v638 = vmul.f32 %v583, 1.442695
        %v639 = vpow.pop %v638
        %v640 = vmul.f32 %v586, 1.442695
        %v641 = vpow.pop %v640
        %v642 = vmul.f32 %v588, 1.442695
        %v643 = vpow.pop %v642
        %v644 = vmul.f32 %v591, 1.442695
        %v645 = vpow.pop %v644
        %v646 = vmul.f32 %v593, 1.442695
        %v647 = vpow.pop %v646
        %v648 = vmul.f32 %v596, 1.442695
        %v649 = vpow.pop %v648
        %v650 = vmul.f32 %v598, 1.442695
        %v651 = vpow.pop %v650
        %v652 = vmul.f32 %v601, 1.442695
        %v653 = vpow.pop %v652
        %v654 = vmul.f32 %v603, 1.442695
        %v655 = vpow.pop %v654
        %v656 = vmul.f32 %v606, 1.442695
        %v657 = vpow.pop %v656
        %v658 = vmul.f32 %v608, 1.442695
        %v659 = vpow.pop %v658
        %v660 = vmul.f32 %v611, 1.442695
        %v661 = vpow.pop %v660
        %v662 = vmul.f32 %v613, 1.442695
        %v663 = vpow.pop %v662
        %v664 = vmul.f32 %v616, 1.442695
        %v665 = vpow.pop %v664
        %v666 = vmul.f32 %v618, 1.442695
        %v667 = vpow.pop %v666
        %v668 = vsub.f32 %v637, 1.0
        %v669 = vsub.f32 %v639, 1.0
        %v670 = vsub.f32 %v641, 1.0
        %v671 = vsub.f32 %v643, 1.0
        %v672 = vsub.f32 %v645, 1.0
        %v673 = vsub.f32 %v647, 1.0
        %v674 = vsub.f32 %v649, 1.0
        %v675 = vsub.f32 %v651, 1.0
        %v676 = vsub.f32 %v653, 1.0
        %v677 = vsub.f32 %v655, 1.0
        %v678 = vsub.f32 %v657, 1.0
        %v679 = vsub.f32 %v659, 1.0
        %v680 = vsub.f32 %v661, 1.0
        %v681 = vsub.f32 %v663, 1.0
        %v682 = vsub.f32 %v665, 1.0
        %v683 = vsub.f32 %v667, 1.0
        %v684 = vsel %vm620, %v581, %v668
        %v685 = vsel %vm621, %v583, %v669
        %v686 = vsel %vm622, %v586, %v670
        %v687 = vsel %vm623, %v588, %v671
        %v688 = vsel %vm624, %v591, %v672
        %v689 = vsel %vm625, %v593, %v673
        %v690 = vsel %vm626, %v596, %v674
        %v691 = vsel %vm627, %v598, %v675
        %v692 = vsel %vm628, %v601, %v676
        %v693 = vsel %vm629, %v603, %v677
        %v694 = vsel %vm630, %v606, %v678
        %v695 = vsel %vm631, %v608, %v679
        %v696 = vsel %vm632, %v611, %v680
        %v697 = vsel %vm633, %v613, %v681
        %v698 = vsel %vm634, %v616, %v682
        %v699 = vsel %vm635, %v618, %v683
        %v700 = vld [vmem:[%s402] sm:$0xff]
        %v701 = vld [vmem:[%s402 + $0x8] sm:$0xff]
        %v702 = vld [vmem:[%s402 + $0x10] sm:$0xff]
        %v703 = vld [vmem:[%s402 + $0x18] sm:$0xff]
        %v704 = vld [vmem:[%s402 + $0x20] sm:$0xff]
        %v705 = vld [vmem:[%s402 + $0x28] sm:$0xff]
        %v706 = vld [vmem:[%s402 + $0x30] sm:$0xff]
        %v707 = vld [vmem:[%s402 + $0x38] sm:$0xff]
        %v708 = vld [vmem:[%s402 + $0x40] sm:$0xff]
        %v709 = vld [vmem:[%s402 + $0x48] sm:$0xff]
        %v710 = vld [vmem:[%s402 + $0x50] sm:$0xff]
        %v711 = vld [vmem:[%s402 + $0x58] sm:$0xff]
        %v712 = vld [vmem:[%s402 + $0x60] sm:$0xff]
        %v713 = vld [vmem:[%s402 + $0x68] sm:$0xff]
        %v714 = vld [vmem:[%s402 + $0x70] sm:$0xff]
        %v715 = vld [vmem:[%s402 + $0x78] sm:$0xff]
        %v716 = vmul.f32 %v684, %v700
        %v717 = vmul.f32 %v685, %v701
        %v718 = vmul.f32 %v686, %v702
        %v719 = vmul.f32 %v687, %v703
        %v720 = vmul.f32 %v688, %v704
        %v721 = vmul.f32 %v689, %v705
        %v722 = vmul.f32 %v690, %v706
        %v723 = vmul.f32 %v691, %v707
        %v724 = vmul.f32 %v692, %v708
        %v725 = vmul.f32 %v693, %v709
        %v726 = vmul.f32 %v694, %v710
        %v727 = vmul.f32 %v695, %v711
        %v728 = vmul.f32 %v696, %v712
        %v729 = vmul.f32 %v697, %v713
        %v730 = vmul.f32 %v698, %v714
        %v731 = vmul.f32 %v699, %v715
        %v732 = vpack.c.bf16 %v717, %v716
        %v733 = vpack.c.bf16 %v719, %v718
        %v734 = vpack.c.bf16 %v721, %v720
        %v735 = vpack.c.bf16 %v723, %v722
        %v736 = vpack.c.bf16 %v725, %v724
        %v737 = vpack.c.bf16 %v727, %v726
        %v738 = vpack.c.bf16 %v729, %v728
        %v739 = vpack.c.bf16 %v731, %v730
        %v740 = vld [vmem:[%s6] sm:$0xf]
        %v741 = vld [vmem:[%s6 + $0x4] sm:$0xf]
        %v742 = vld [vmem:[%s6 + $0x8] sm:$0xf]
        %v743 = vld [vmem:[%s6 + $0xc] sm:$0xf]
        %v744 = vld [vmem:[%s6 + $0x10] sm:$0xf]
        %v745 = vld [vmem:[%s6 + $0x14] sm:$0xf]
        %v746 = vld [vmem:[%s6 + $0x18] sm:$0xf]
        %v747 = vld [vmem:[%s6 + $0x1c] sm:$0xf]
        %v748 = vld [vmem:[%s6 + $0x20] sm:$0xf]
        %v749 = vld [vmem:[%s6 + $0x24] sm:$0xf]
        %v750 = vld [vmem:[%s6 + $0x28] sm:$0xf]
        %v751 = vld [vmem:[%s6 + $0x2c] sm:$0xf]
        %v752 = vld [vmem:[%s6 + $0x30] sm:$0xf]
        %v753 = vld [vmem:[%s6 + $0x34] sm:$0xf]
        %v754 = vld [vmem:[%s6 + $0x38] sm:$0xf]
        %v755 = vld [vmem:[%s6 + $0x3c] sm:$0xf]
        %v756 = vld [vmem:[%s7] sm:$0x1]
        %v758 = vperm.slane %v756, 0
        %v776 = vunpack.c.l.b16 %v740
        %v777 = vunpack.c.l.b16 %v741
        %v778 = vunpack.c.l.b16 %v742
        %v779 = vunpack.c.l.b16 %v743
        %v780 = vunpack.c.l.b16 %v744
        %v781 = vunpack.c.l.b16 %v745
        %v782 = vunpack.c.l.b16 %v746
        %v783 = vunpack.c.l.b16 %v747
        %v784 = vunpack.c.l.b16 %v748
        %v785 = vunpack.c.l.b16 %v749
        %v786 = vunpack.c.l.b16 %v750
        %v787 = vunpack.c.l.b16 %v751
        %v788 = vunpack.c.l.b16 %v752
        %v789 = vunpack.c.l.b16 %v753
        %v790 = vunpack.c.l.b16 %v754
        %v791 = vunpack.c.l.b16 %v755
        %v792 = vpack.c.b16 %v777, %v776
        %v793 = vpack.c.b16 %v779, %v778
        %v794 = vpack.c.b16 %v781, %v780
        %v795 = vpack.c.b16 %v783, %v782
        %v796 = vpack.c.b16 %v785, %v784
        %v797 = vpack.c.b16 %v787, %v786
        %v798 = vpack.c.b16 %v789, %v788
        %v799 = vpack.c.b16 %v791, %v790
        %808 = vmatpush.bf16.msra.mxu0 %v799
        %809 = vmatpush.bf16.msra.mxu0 %v798
        %810 = vmatpush.bf16.msra.mxu0 %v797
        %811 = vmatpush.bf16.msra.mxu0 %v796
        %812 = vmatpush.bf16.msra.mxu0 %v795
        %813 = vmatpush.bf16.msra.mxu0 %v794
        %814 = vmatpush.bf16.msra.mxu0 %v793
        %815 = vmatpush.bf16.msra.mxu0 %v792
        %816 = vmatmul.bf16.gmra.mxu0 %v732
        %v817 = vpop.f32.mrf.mxu0
        %v818 = vadd.f32 %v758, %v817
        %v819 = vpop.f32.mrf.mxu0
        %v820 = vadd.f32 %v758, %v819
        %821 = vmatmul.bf16.gmra.mxu0 %v733
        %v822 = vpop.f32.mrf.mxu0
        %v823 = vadd.f32 %v758, %v822
        %v824 = vpop.f32.mrf.mxu0
        %v825 = vadd.f32 %v758, %v824
        %826 = vmatmul.bf16.gmra.mxu0 %v734
        %v827 = vpop.f32.mrf.mxu0
        %v828 = vadd.f32 %v758, %v827
        %v829 = vpop.f32.mrf.mxu0
        %v830 = vadd.f32 %v758, %v829
        %831 = vmatmul.bf16.gmra.mxu0 %v735
        %v832 = vpop.f32.mrf.mxu0
        %v833 = vadd.f32 %v758, %v832
        %v834 = vpop.f32.mrf.mxu0
        %v835 = vadd.f32 %v758, %v834
        %836 = vmatmul.bf16.gmra.mxu0 %v736
        %v837 = vpop.f32.mrf.mxu0
        %v838 = vadd.f32 %v758, %v837
        %v839 = vpop.f32.mrf.mxu0
        %v840 = vadd.f32 %v758, %v839
        %841 = vmatmul.bf16.gmra.mxu0 %v737
        %v842 = vpop.f32.mrf.mxu0
        %v843 = vadd.f32 %v758, %v842
        %v844 = vpop.f32.mrf.mxu0
        %v845 = vadd.f32 %v758, %v844
        %846 = vmatmul.bf16.gmra.mxu0 %v738
        %v847 = vpop.f32.mrf.mxu0
        %v848 = vadd.f32 %v758, %v847
        %v849 = vpop.f32.mrf.mxu0
        %v850 = vadd.f32 %v758, %v849
        %851 = vmatmul.bf16.gmra.mxu0 %v739
        %v852 = vpop.f32.mrf.mxu0
        %v853 = vadd.f32 %v758, %v852
        %v854 = vpop.f32.mrf.mxu0
        %v855 = vadd.f32 %v758, %v854
        %856 = vdwg.mxu0
        %vm857 = vcmp.gt.f32.partialorder %v818, 0.0
        %vm858 = vcmp.gt.f32.partialorder %v820, 0.0
        %vm859 = vcmp.gt.f32.partialorder %v823, 0.0
        %vm860 = vcmp.gt.f32.partialorder %v825, 0.0
        %vm861 = vcmp.gt.f32.partialorder %v828, 0.0
        %vm862 = vcmp.gt.f32.partialorder %v830, 0.0
        %vm863 = vcmp.gt.f32.partialorder %v833, 0.0
        %vm864 = vcmp.gt.f32.partialorder %v835, 0.0
        %vm865 = vcmp.gt.f32.partialorder %v838, 0.0
        %vm866 = vcmp.gt.f32.partialorder %v840, 0.0
        %vm867 = vcmp.gt.f32.partialorder %v843, 0.0
        %vm868 = vcmp.gt.f32.partialorder %v845, 0.0
        %vm869 = vcmp.gt.f32.partialorder %v848, 0.0
        %vm870 = vcmp.gt.f32.partialorder %v850, 0.0
        %vm871 = vcmp.gt.f32.partialorder %v853, 0.0
        %vm872 = vcmp.gt.f32.partialorder %v855, 0.0
        %v873 = vmul.f32 %v818, 1.442695
        %v874 = vpow.pop %v873
        %v875 = vmul.f32 %v820, 1.442695
        %v876 = vpow.pop %v875
        %v877 = vmul.f32 %v823, 1.442695
        %v878 = vpow.pop %v877
        %v879 = vmul.f32 %v825, 1.442695
        %v880 = vpow.pop %v879
        %v881 = vmul.f32 %v828, 1.442695
        %v882 = vpow.pop %v881
        %v883 = vmul.f32 %v830, 1.442695
        %v884 = vpow.pop %v883
        %v885 = vmul.f32 %v833, 1.442695
        %v886 = vpow.pop %v885
        %v887 = vmul.f32 %v835, 1.442695
        %v888 = vpow.pop %v887
        %v889 = vmul.f32 %v838, 1.442695
        %v890 = vpow.pop %v889
        %v891 = vmul.f32 %v840, 1.442695
        %v892 = vpow.pop %v891
        %v893 = vmul.f32 %v843, 1.442695
        %v894 = vpow.pop %v893
        %v895 = vmul.f32 %v845, 1.442695
        %v896 = vpow.pop %v895
        %v897 = vmul.f32 %v848, 1.442695
        %v898 = vpow.pop %v897
        %v899 = vmul.f32 %v850, 1.442695
        %v900 = vpow.pop %v899
        %v901 = vmul.f32 %v853, 1.442695
        %v902 = vpow.pop %v901
        %v903 = vmul.f32 %v855, 1.442695
        %v904 = vpow.pop %v903
        %v905 = vsub.f32 %v874, 1.0
        %v906 = vsub.f32 %v876, 1.0
        %v907 = vsub.f32 %v878, 1.0
        %v908 = vsub.f32 %v880, 1.0
        %v909 = vsub.f32 %v882, 1.0
        %v910 = vsub.f32 %v884, 1.0
        %v911 = vsub.f32 %v886, 1.0
        %v912 = vsub.f32 %v888, 1.0
        %v913 = vsub.f32 %v890, 1.0
        %v914 = vsub.f32 %v892, 1.0
        %v915 = vsub.f32 %v894, 1.0
        %v916 = vsub.f32 %v896, 1.0
        %v917 = vsub.f32 %v898, 1.0
        %v918 = vsub.f32 %v900, 1.0
        %v919 = vsub.f32 %v902, 1.0
        %v920 = vsub.f32 %v904, 1.0
        %v921 = vsel %vm857, %v818, %v905
        %v922 = vsel %vm858, %v820, %v906
        %v923 = vsel %vm859, %v823, %v907
        %v924 = vsel %vm860, %v825, %v908
        %v925 = vsel %vm861, %v828, %v909
        %v926 = vsel %vm862, %v830, %v910
        %v927 = vsel %vm863, %v833, %v911
        %v928 = vsel %vm864, %v835, %v912
        %v929 = vsel %vm865, %v838, %v913
        %v930 = vsel %vm866, %v840, %v914
        %v931 = vsel %vm867, %v843, %v915
        %v932 = vsel %vm868, %v845, %v916
        %v933 = vsel %vm869, %v848, %v917
        %v934 = vsel %vm870, %v850, %v918
        %v935 = vsel %vm871, %v853, %v919
        %v936 = vsel %vm872, %v855, %v920
        %v937 = vld [vmem:[%s412] sm:$0xff]
        %v938 = vld [vmem:[%s412 + $0x8] sm:$0xff]
        %v939 = vld [vmem:[%s412 + $0x10] sm:$0xff]
        %v940 = vld [vmem:[%s412 + $0x18] sm:$0xff]
        %v941 = vld [vmem:[%s412 + $0x20] sm:$0xff]
        %v942 = vld [vmem:[%s412 + $0x28] sm:$0xff]
        %v943 = vld [vmem:[%s412 + $0x30] sm:$0xff]
        %v944 = vld [vmem:[%s412 + $0x38] sm:$0xff]
        %v945 = vld [vmem:[%s412 + $0x40] sm:$0xff]
        %v946 = vld [vmem:[%s412 + $0x48] sm:$0xff]
        %v947 = vld [vmem:[%s412 + $0x50] sm:$0xff]
        %v948 = vld [vmem:[%s412 + $0x58] sm:$0xff]
        %v949 = vld [vmem:[%s412 + $0x60] sm:$0xff]
        %v950 = vld [vmem:[%s412 + $0x68] sm:$0xff]
        %v951 = vld [vmem:[%s412 + $0x70] sm:$0xff]
        %v952 = vld [vmem:[%s412 + $0x78] sm:$0xff]
        %v953 = vmul.f32 %v921, %v937
        %v954 = vmul.f32 %v922, %v938
        %v955 = vmul.f32 %v923, %v939
        %v956 = vmul.f32 %v924, %v940
        %v957 = vmul.f32 %v925, %v941
        %v958 = vmul.f32 %v926, %v942
        %v959 = vmul.f32 %v927, %v943
        %v960 = vmul.f32 %v928, %v944
        %v961 = vmul.f32 %v929, %v945
        %v962 = vmul.f32 %v930, %v946
        %v963 = vmul.f32 %v931, %v947
        %v964 = vmul.f32 %v932, %v948
        %v965 = vmul.f32 %v933, %v949
        %v966 = vmul.f32 %v934, %v950
        %v967 = vmul.f32 %v935, %v951
        %v968 = vmul.f32 %v936, %v952
        %v969 = vpack.c.bf16 %v954, %v953
        %v970 = vpack.c.bf16 %v956, %v955
        %v971 = vpack.c.bf16 %v958, %v957
        %v972 = vpack.c.bf16 %v960, %v959
        %v973 = vpack.c.bf16 %v962, %v961
        %v974 = vpack.c.bf16 %v964, %v963
        %v975 = vpack.c.bf16 %v966, %v965
        %v976 = vpack.c.bf16 %v968, %v967
        %v977 = vld [vmem:[%s8] sm:$0xf]
        %v978 = vld [vmem:[%s8 + $0x4] sm:$0xf]
        %v979 = vld [vmem:[%s8 + $0x8] sm:$0xf]
        %v980 = vld [vmem:[%s8 + $0xc] sm:$0xf]
        %v981 = vld [vmem:[%s8 + $0x10] sm:$0xf]
        %v982 = vld [vmem:[%s8 + $0x14] sm:$0xf]
        %v983 = vld [vmem:[%s8 + $0x18] sm:$0xf]
        %v984 = vld [vmem:[%s8 + $0x1c] sm:$0xf]
        %v985 = vld [vmem:[%s8 + $0x20] sm:$0xf]
        %v986 = vld [vmem:[%s8 + $0x24] sm:$0xf]
        %v987 = vld [vmem:[%s8 + $0x28] sm:$0xf]
        %v988 = vld [vmem:[%s8 + $0x2c] sm:$0xf]
        %v989 = vld [vmem:[%s8 + $0x30] sm:$0xf]
        %v990 = vld [vmem:[%s8 + $0x34] sm:$0xf]
        %v991 = vld [vmem:[%s8 + $0x38] sm:$0xf]
        %v992 = vld [vmem:[%s8 + $0x3c] sm:$0xf]
        %v993 = vld [vmem:[%s9] sm:$0x1]
        %v995 = vperm.slane %v993, 0
        %v1013 = vunpack.c.l.b16 %v977
        %v1014 = vunpack.c.l.b16 %v978
        %v1015 = vunpack.c.l.b16 %v979
        %v1016 = vunpack.c.l.b16 %v980
        %v1017 = vunpack.c.l.b16 %v981
        %v1018 = vunpack.c.l.b16 %v982
        %v1019 = vunpack.c.l.b16 %v983
        %v1020 = vunpack.c.l.b16 %v984
        %v1021 = vunpack.c.l.b16 %v985
        %v1022 = vunpack.c.l.b16 %v986
        %v1023 = vunpack.c.l.b16 %v987
        %v1024 = vunpack.c.l.b16 %v988
        %v1025 = vunpack.c.l.b16 %v989
        %v1026 = vunpack.c.l.b16 %v990
        %v1027 = vunpack.c.l.b16 %v991
        %v1028 = vunpack.c.l.b16 %v992
        %v1029 = vpack.c.b16 %v1014, %v1013
        %v1030 = vpack.c.b16 %v1016, %v1015
        %v1031 = vpack.c.b16 %v1018, %v1017
        %v1032 = vpack.c.b16 %v1020, %v1019
        %v1033 = vpack.c.b16 %v1022, %v1021
        %v1034 = vpack.c.b16 %v1024, %v1023
        %v1035 = vpack.c.b16 %v1026, %v1025
        %v1036 = vpack.c.b16 %v1028, %v1027
        %1045 = vmatpush.bf16.msra.mxu0 %v1036
        %1046 = vmatpush.bf16.msra.mxu0 %v1035
        %1047 = vmatpush.bf16.msra.mxu0 %v1034
        %1048 = vmatpush.bf16.msra.mxu0 %v1033
        %1049 = vmatpush.bf16.msra.mxu0 %v1032
        %1050 = vmatpush.bf16.msra.mxu0 %v1031
        %1051 = vmatpush.bf16.msra.mxu0 %v1030
        %1052 = vmatpush.bf16.msra.mxu0 %v1029
        %1053 = vmatmul.bf16.gmra.mxu0 %v969
        %v1054 = vpop.f32.mrf.mxu0
        %v1055 = vadd.f32 %v995, %v1054
        %v1056 = vpop.f32.mrf.mxu0
        %v1057 = vadd.f32 %v995, %v1056
        %1058 = vmatmul.bf16.gmra.mxu0 %v970
        %v1059 = vpop.f32.mrf.mxu0
        %v1060 = vadd.f32 %v995, %v1059
        %v1061 = vpop.f32.mrf.mxu0
        %v1062 = vadd.f32 %v995, %v1061
        %1063 = vmatmul.bf16.gmra.mxu0 %v971
        %v1064 = vpop.f32.mrf.mxu0
        %v1065 = vadd.f32 %v995, %v1064
        %v1066 = vpop.f32.mrf.mxu0
        %v1067 = vadd.f32 %v995, %v1066
        %1068 = vmatmul.bf16.gmra.mxu0 %v972
        %v1069 = vpop.f32.mrf.mxu0
        %v1070 = vadd.f32 %v995, %v1069
        %v1071 = vpop.f32.mrf.mxu0
        %v1072 = vadd.f32 %v995, %v1071
        %1073 = vmatmul.bf16.gmra.mxu0 %v973
        %v1074 = vpop.f32.mrf.mxu0
        %v1075 = vadd.f32 %v995, %v1074
        %v1076 = vpop.f32.mrf.mxu0
        %v1077 = vadd.f32 %v995, %v1076
        %1078 = vmatmul.bf16.gmra.mxu0 %v974
        %v1079 = vpop.f32.mrf.mxu0
        %v1080 = vadd.f32 %v995, %v1079
        %v1081 = vpop.f32.mrf.mxu0
        %v1082 = vadd.f32 %v995, %v1081
        %1083 = vmatmul.bf16.gmra.mxu0 %v975
        %v1084 = vpop.f32.mrf.mxu0
        %v1085 = vadd.f32 %v995, %v1084
        %v1086 = vpop.f32.mrf.mxu0
        %v1087 = vadd.f32 %v995, %v1086
        %1088 = vmatmul.bf16.gmra.mxu0 %v976
        %v1089 = vpop.f32.mrf.mxu0
        %v1090 = vadd.f32 %v995, %v1089
        %v1091 = vpop.f32.mrf.mxu0
        %v1092 = vadd.f32 %v995, %v1091
        %1093 = vdwg.mxu0
        %v1094 = vld [vmem:[%s480] sm:$0xff]
        %v1095 = vld [vmem:[%s480 + $0x8] sm:$0xff]
        %v1096 = vld [vmem:[%s480 + $0x10] sm:$0xff]
        %v1097 = vld [vmem:[%s480 + $0x18] sm:$0xff]
        %v1098 = vld [vmem:[%s480 + $0x20] sm:$0xff]
        %v1099 = vld [vmem:[%s480 + $0x28] sm:$0xff]
        %v1100 = vld [vmem:[%s480 + $0x30] sm:$0xff]
        %v1101 = vld [vmem:[%s480 + $0x38] sm:$0xff]
        %v1102 = vld [vmem:[%s480 + $0x40] sm:$0xff]
        %v1103 = vld [vmem:[%s480 + $0x48] sm:$0xff]
        %v1104 = vld [vmem:[%s480 + $0x50] sm:$0xff]
        %v1105 = vld [vmem:[%s480 + $0x58] sm:$0xff]
        %v1106 = vld [vmem:[%s480 + $0x60] sm:$0xff]
        %v1107 = vld [vmem:[%s480 + $0x68] sm:$0xff]
        %v1108 = vld [vmem:[%s480 + $0x70] sm:$0xff]
        %v1109 = vld [vmem:[%s480 + $0x78] sm:$0xff]
        %v1110 = vadd.f32 %v1055, %v1094
        %v1111 = vadd.f32 %v1057, %v1095
        %v1112 = vadd.f32 %v1060, %v1096
        %v1113 = vadd.f32 %v1062, %v1097
        %v1114 = vadd.f32 %v1065, %v1098
        %v1115 = vadd.f32 %v1067, %v1099
        %v1116 = vadd.f32 %v1070, %v1100
        %v1117 = vadd.f32 %v1072, %v1101
        %v1118 = vadd.f32 %v1075, %v1102
        %v1119 = vadd.f32 %v1077, %v1103
        %v1120 = vadd.f32 %v1080, %v1104
        %v1121 = vadd.f32 %v1082, %v1105
        %v1122 = vadd.f32 %v1085, %v1106
        %v1123 = vadd.f32 %v1087, %v1107
        %v1124 = vadd.f32 %v1090, %v1108
        %v1125 = vadd.f32 %v1092, %v1109
        %1126 = vmax.xlane.f32.xlu0 %v1110
        %v1127 = vpop.xlane.xlu0 %1126
        %1128 = vmax.xlane.f32.xlu0 %v1111
        %v1129 = vpop.xlane.xlu0 %1128
        %1130 = vmax.xlane.f32.xlu0 %v1112
        %v1131 = vpop.xlane.xlu0 %1130
        %1132 = vmax.xlane.f32.xlu0 %v1113
        %v1133 = vpop.xlane.xlu0 %1132
        %1134 = vmax.xlane.f32.xlu0 %v1114
        %v1135 = vpop.xlane.xlu0 %1134
        %1136 = vmax.xlane.f32.xlu0 %v1115
        %v1137 = vpop.xlane.xlu0 %1136
        %1138 = vmax.xlane.f32.xlu0 %v1116
        %v1139 = vpop.xlane.xlu0 %1138
        %1140 = vmax.xlane.f32.xlu0 %v1117
        %v1141 = vpop.xlane.xlu0 %1140
        %1142 = vmax.xlane.f32.xlu0 %v1118
        %v1143 = vpop.xlane.xlu0 %1142
        %1144 = vmax.xlane.f32.xlu0 %v1119
        %v1145 = vpop.xlane.xlu0 %1144
        %1146 = vmax.xlane.f32.xlu0 %v1120
        %v1147 = vpop.xlane.xlu0 %1146
        %1148 = vmax.xlane.f32.xlu0 %v1121
        %v1149 = vpop.xlane.xlu0 %1148
        %1150 = vmax.xlane.f32.xlu0 %v1122
        %v1151 = vpop.xlane.xlu0 %1150
        %1152 = vmax.xlane.f32.xlu0 %v1123
        %v1153 = vpop.xlane.xlu0 %1152
        %1154 = vmax.xlane.f32.xlu0 %v1124
        %v1155 = vpop.xlane.xlu0 %1154
        %1156 = vmax.xlane.f32.xlu0 %v1125
        %v1157 = vpop.xlane.xlu0 %1156
        %v1158 = vsub.f32 %v1110, %v1127
        %v1159 = vsub.f32 %v1111, %v1129
        %v1160 = vsub.f32 %v1112, %v1131
        %v1161 = vsub.f32 %v1113, %v1133
        %v1162 = vsub.f32 %v1114, %v1135
        %v1163 = vsub.f32 %v1115, %v1137
        %v1164 = vsub.f32 %v1116, %v1139
        %v1165 = vsub.f32 %v1117, %v1141
        %v1166 = vsub.f32 %v1118, %v1143
        %v1167 = vsub.f32 %v1119, %v1145
        %v1168 = vsub.f32 %v1120, %v1147
        %v1169 = vsub.f32 %v1121, %v1149
        %v1170 = vsub.f32 %v1122, %v1151
        %v1171 = vsub.f32 %v1123, %v1153
        %v1172 = vsub.f32 %v1124, %v1155
        %v1173 = vsub.f32 %v1125, %v1157
        %v1174 = vmul.f32 %v1158, 1.442695
        %v1175 = vpow.pop %v1174
        %v1176 = vmul.f32 %v1159, 1.442695
        %v1177 = vpow.pop %v1176
        %v1178 = vmul.f32 %v1160, 1.442695
        %v1179 = vpow.pop %v1178
        %v1180 = vmul.f32 %v1161, 1.442695
        %v1181 = vpow.pop %v1180
        %v1182 = vmul.f32 %v1162, 1.442695
        %v1183 = vpow.pop %v1182
        %v1184 = vmul.f32 %v1163, 1.442695
        %v1185 = vpow.pop %v1184
        %v1186 = vmul.f32 %v1164, 1.442695
        %v1187 = vpow.pop %v1186
        %v1188 = vmul.f32 %v1165, 1.442695
        %v1189 = vpow.pop %v1188
        %v1190 = vmul.f32 %v1166, 1.442695
        %v1191 = vpow.pop %v1190
        %v1192 = vmul.f32 %v1167, 1.442695
        %v1193 = vpow.pop %v1192
        %v1194 = vmul.f32 %v1168, 1.442695
        %v1195 = vpow.pop %v1194
        %v1196 = vmul.f32 %v1169, 1.442695
        %v1197 = vpow.pop %v1196
        %v1198 = vmul.f32 %v1170, 1.442695
        %v1199 = vpow.pop %v1198
        %v1200 = vmul.f32 %v1171, 1.442695
        %v1201 = vpow.pop %v1200
        %v1202 = vmul.f32 %v1172, 1.442695
        %v1203 = vpow.pop %v1202
        %v1204 = vmul.f32 %v1173, 1.442695
        %v1205 = vpow.pop %v1204
        %1206 = vadd.xlane.f32.xlu0 %v1175
        %v1207 = vpop.xlane.xlu0 %1206
        %1208 = vadd.xlane.f32.xlu0 %v1177
        %v1209 = vpop.xlane.xlu0 %1208
        %1210 = vadd.xlane.f32.xlu0 %v1179
        %v1211 = vpop.xlane.xlu0 %1210
        %1212 = vadd.xlane.f32.xlu0 %v1181
        %v1213 = vpop.xlane.xlu0 %1212
        %1214 = vadd.xlane.f32.xlu0 %v1183
        %v1215 = vpop.xlane.xlu0 %1214
        %1216 = vadd.xlane.f32.xlu0 %v1185
        %v1217 = vpop.xlane.xlu0 %1216
        %1218 = vadd.xlane.f32.xlu0 %v1187
        %v1219 = vpop.xlane.xlu0 %1218
        %1220 = vadd.xlane.f32.xlu0 %v1189
        %v1221 = vpop.xlane.xlu0 %1220
        %1222 = vadd.xlane.f32.xlu0 %v1191
        %v1223 = vpop.xlane.xlu0 %1222
        %1224 = vadd.xlane.f32.xlu0 %v1193
        %v1225 = vpop.xlane.xlu0 %1224
        %1226 = vadd.xlane.f32.xlu0 %v1195
        %v1227 = vpop.xlane.xlu0 %1226
        %1228 = vadd.xlane.f32.xlu0 %v1197
        %v1229 = vpop.xlane.xlu0 %1228
        %1230 = vadd.xlane.f32.xlu0 %v1199
        %v1231 = vpop.xlane.xlu0 %1230
        %1232 = vadd.xlane.f32.xlu0 %v1201
        %v1233 = vpop.xlane.xlu0 %1232
        %1234 = vadd.xlane.f32.xlu0 %v1203
        %v1235 = vpop.xlane.xlu0 %1234
        %1236 = vadd.xlane.f32.xlu0 %v1205
        %v1237 = vpop.xlane.xlu0 %1236
        %v1238 = vrcp.pop %v1207
        %v1239 = vrcp.pop %v1209
        %v1240 = vrcp.pop %v1211
        %v1241 = vrcp.pop %v1213
        %v1242 = vrcp.pop %v1215
        %v1243 = vrcp.pop %v1217
        %v1244 = vrcp.pop %v1219
        %v1245 = vrcp.pop %v1221
        %v1246 = vrcp.pop %v1223
        %v1247 = vrcp.pop %v1225
        %v1248 = vrcp.pop %v1227
        %v1249 = vrcp.pop %v1229
        %v1250 = vrcp.pop %v1231
        %v1251 = vrcp.pop %v1233
        %v1252 = vrcp.pop %v1235
        %v1253 = vrcp.pop %v1237
        %v1254 = vmul.f32 %v1175, %v1238
        %v1255 = vmul.f32 %v1177, %v1239
        %v1256 = vmul.f32 %v1179, %v1240
        %v1257 = vmul.f32 %v1181, %v1241
        %v1258 = vmul.f32 %v1183, %v1242
        %v1259 = vmul.f32 %v1185, %v1243
        %v1260 = vmul.f32 %v1187, %v1244
        %v1261 = vmul.f32 %v1189, %v1245
        %v1262 = vmul.f32 %v1191, %v1246
        %v1263 = vmul.f32 %v1193, %v1247
        %v1264 = vmul.f32 %v1195, %v1248
        %v1265 = vmul.f32 %v1197, %v1249
        %v1266 = vmul.f32 %v1199, %v1250
        %v1267 = vmul.f32 %v1201, %v1251
        %v1268 = vmul.f32 %v1203, %v1252
        %v1269 = vmul.f32 %v1205, %v1253
        %v1270 = vlaneseq
        %v1271 = vand.u32 %v1270, 127
        %vm1272 = vcmp.eq.s32.totalorder %v1271, 32
        %1274 = vset.pattern.permute.xlu0 32
        %1275 = vperm.xlu0 %1274, %v1055
        %v1276 = vpop.permute.xlu0 %1275
        %1279 = vset.pattern.permute.xlu0 32
        %1280 = vperm.xlu0 %1279, %v1057
        %v1281 = vpop.permute.xlu0 %1280
        %1284 = vset.pattern.permute.xlu0 32
        %1285 = vperm.xlu0 %1284, %v1060
        %v1286 = vpop.permute.xlu0 %1285
        %1289 = vset.pattern.permute.xlu0 32
        %1290 = vperm.xlu0 %1289, %v1062
        %v1291 = vpop.permute.xlu0 %1290
        %1294 = vset.pattern.permute.xlu0 32
        %1295 = vperm.xlu0 %1294, %v1065
        %v1296 = vpop.permute.xlu0 %1295
        %1299 = vset.pattern.permute.xlu0 32
        %1300 = vperm.xlu0 %1299, %v1067
        %v1301 = vpop.permute.xlu0 %1300
        %1304 = vset.pattern.permute.xlu0 32
        %1305 = vperm.xlu0 %1304, %v1070
        %v1306 = vpop.permute.xlu0 %1305
        %1309 = vset.pattern.permute.xlu0 32
        %1310 = vperm.xlu0 %1309, %v1072
        %v1311 = vpop.permute.xlu0 %1310
        %1314 = vset.pattern.permute.xlu0 32
        %1315 = vperm.xlu0 %1314, %v1075
        %v1316 = vpop.permute.xlu0 %1315
        %1319 = vset.pattern.permute.xlu0 32
        %1320 = vperm.xlu0 %1319, %v1077
        %v1321 = vpop.permute.xlu0 %1320
        %1324 = vset.pattern.permute.xlu0 32
        %1325 = vperm.xlu0 %1324, %v1080
        %v1326 = vpop.permute.xlu0 %1325
        %1329 = vset.pattern.permute.xlu0 32
        %1330 = vperm.xlu0 %1329, %v1082
        %v1331 = vpop.permute.xlu0 %1330
        %1334 = vset.pattern.permute.xlu0 32
        %1335 = vperm.xlu0 %1334, %v1085
        %v1336 = vpop.permute.xlu0 %1335
        %1339 = vset.pattern.permute.xlu0 32
        %1340 = vperm.xlu0 %1339, %v1087
        %v1341 = vpop.permute.xlu0 %1340
        %1344 = vset.pattern.permute.xlu0 32
        %1345 = vperm.xlu0 %1344, %v1090
        %v1346 = vpop.permute.xlu0 %1345
        %1349 = vset.pattern.permute.xlu0 32
        %1350 = vperm.xlu0 %1349, %v1092
        %v1351 = vpop.permute.xlu0 %1350
        %v1353 = vsel %vm1272, %v1276, %v1254
        %v1354 = vsel %vm1272, %v1281, %v1255
        %v1355 = vsel %vm1272, %v1286, %v1256
        %v1356 = vsel %vm1272, %v1291, %v1257
        %v1357 = vsel %vm1272, %v1296, %v1258
        %v1358 = vsel %vm1272, %v1301, %v1259
        %v1359 = vsel %vm1272, %v1306, %v1260
        %v1360 = vsel %vm1272, %v1311, %v1261
        %v1361 = vsel %vm1272, %v1316, %v1262
        %v1362 = vsel %vm1272, %v1321, %v1263
        %v1363 = vsel %vm1272, %v1326, %v1264
        %v1364 = vsel %vm1272, %v1331, %v1265
        %v1365 = vsel %vm1272, %v1336, %v1266
        %v1366 = vsel %vm1272, %v1341, %v1267
        %v1367 = vsel %vm1272, %v1346, %v1268
        %v1368 = vsel %vm1272, %v1351, %v1269
        %1369 = vst [vmem:[%s469] sm:$0xff] %v1353
        %1370 = vst [vmem:[%s469 + $0x8] sm:$0xff] %v1354
        %1371 = vst [vmem:[%s469 + $0x10] sm:$0xff] %v1355
        %1372 = vst [vmem:[%s469 + $0x18] sm:$0xff] %v1356
        %1373 = vst [vmem:[%s469 + $0x20] sm:$0xff] %v1357
        %1374 = vst [vmem:[%s469 + $0x28] sm:$0xff] %v1358
        %1375 = vst [vmem:[%s469 + $0x30] sm:$0xff] %v1359
        %1376 = vst [vmem:[%s469 + $0x38] sm:$0xff] %v1360
        %1377 = vst [vmem:[%s469 + $0x40] sm:$0xff] %v1361
        %1378 = vst [vmem:[%s469 + $0x48] sm:$0xff] %v1362
        %1379 = vst [vmem:[%s469 + $0x50] sm:$0xff] %v1363
        %1380 = vst [vmem:[%s469 + $0x58] sm:$0xff] %v1364
        %1381 = vst [vmem:[%s469 + $0x60] sm:$0xff] %v1365
        %1382 = vst [vmem:[%s469 + $0x68] sm:$0xff] %v1366
        %1383 = vst [vmem:[%s469 + $0x70] sm:$0xff] %v1367
        %1384 = vst [vmem:[%s469 + $0x78] sm:$0xff] %v1368
        %s1385 = sand.u32 %s268, 1
        %s1386 = scalar_lea.sflag [#allocation4], %s1385
        %s1387 = sand.u32 %s268, 1
        %s1388 = smul.addr %s1387, 128
        %s1389 = scalar_lea.vmem [#allocation8], %s1388
        // Predicated region
        $region73: #{tpu_custom_call.1} parent=59 // pred_check
          %p1390 = pneg %p278
        $region74: #{tpu_custom_call.1} parent=59 // pred_check_branch
          %1392 = sbr.rel (%p1390) target = $region76
        $region75: #{tpu_custom_call.1} parent=59 // pred_region
          %s1393 = smul.u32 16, %s30
          %1395 = vsyncadd %s1386, 0
          %s1396 = smul.addr %s1393, 8
          %s1397 = scalar_lea.hbm %s10, %s1396
          %s1398 = sshll.u32 %s1389, 4
          %s1399 = int_to_ptr.vmem [resolvable:$true] %s1398
          %s1400 = sshll.u32 %s1397, 4
          %s1401 = int_to_ptr.hbm [resolvable:$true] %s1400
          %1406 = dma.vmem_to_hbm [thread:$0]  %s1399, 2048, %s1401, %s1386, 128, 128, 8
        $region76: #{tpu_custom_call.1} parent=59 // pred_fallthru
          _
      $region60: #{tpu_custom_call.1} parent=5 // pred_fallthru
        _
      %p1407 = scmp.le.s32.totalorder 2, %s25
      // Predicated region
      $region77: #{tpu_custom_call.1} parent=5 // pred_check
        %p1408 = pneg %p1407
      $region78: #{tpu_custom_call.1} parent=5 // pred_check_branch
        %1410 = sbr.rel (%p1408) target = $region80
      $region79: #{tpu_custom_call.1} parent=5 // pred_region
        %s1411 = ssub.s32 %s25, 2
        // Predicated region
        $region81: #{tpu_custom_call.1} parent=79 // pred_check
          %p1412 = pneg %p284
        $region82: #{tpu_custom_call.1} parent=79 // pred_check_branch
          %1414 = sbr.rel (%p1412) target = $region84
        $region83: #{tpu_custom_call.1} parent=79 // pred_region
          %s1415 = sand.u32 %s269, 1
          %s1416 = scalar_lea.sflag [#allocation4], %s1415
          %s1417 = sand.u32 %s269, 1
          %s1418 = smul.addr %s1417, 128
          %s1419 = scalar_lea.vmem [#allocation8], %s1418
          %1421 = dma.done %s1416, 2048
        $region84: #{tpu_custom_call.1} parent=79 // pred_fallthru
          _
      $region80: #{tpu_custom_call.1} parent=5 // pred_fallthru
        _
    $region6: #{tpu_custom_call.1} parent=1 // loop_footer
      %s29 = sadd.s32 1, %s25
    $region7: #{tpu_custom_call.1} parent=1 // loop_footer_branch
      %24 = sbr.rel target = $region3
    $region8: #{tpu_custom_call.1} parent=1 // loop_exit
      _
    %1422 = vsyncpa [#allocation3], 1
    %s1423 = scalar_lea.sflag [#allocation3], 1
    %1424 = vsyncpa %s1423, 1
    %1425 = vsyncpa [#allocation6], 1
    %s1426 = scalar_lea.sflag [#allocation6], 1
    %1427 = vsyncpa %s1426, 1
    %1428 = vsyncpa [#allocation4], 1
    %s1429 = scalar_lea.sflag [#allocation4], 1
    %1430 = vsyncpa %s1429, 1

</llo_original>
